<compile_context>
chip_gen: v5e
topology: v5e:2x2
jax: 0.10.0
libtpu: 0.0.40
codegen_flags: <defaults>
</compile_context>

<pallas_src>
import functools

import jax
import jax.numpy as jnp
from jax.experimental import pallas as pl
from jax.experimental.pallas import tpu as pltpu

# ----------------------------------------------------------------------------
# Shapes.  n_mels is the real 128; time_steps is scaled down for the demo
# (real ~15617 only lengthens the grid, the kernel structure is identical).
# ----------------------------------------------------------------------------
LATENT_DIM = 100
H1 = 512
H2 = 256
N_MELS = 128
TIME_STEPS = 32
INPUT_SHAPE = (1, N_MELS, TIME_STEPS)
OUT_DIM = 1 * N_MELS * TIME_STEPS          # 4096 in the demo
BATCH = 4

B_PAD = 8            # pad batch (sublane dim) to the f32 sublane tile
LATENT_PAD = 128     # pad latent 100 -> 128 lanes
TN = 1024            # output-feature tile (multiple of 128).  At real shapes
                     # (OUT_DIM ~2M) use 4096-8192, sized against v7x's
                     # 64 MiB VMEM; kernel B is mem-bound on the w3 stream, so
                     # bigger tiles just amortize per-step overhead.
BN_EPS = 1e-5
NEG_SLOPE = 0.2

assert OUT_DIM % TN == 0


def _leaky_relu(x, slope):
    return jnp.where(x >= 0, x, slope * x)


def _bn_train_masked(x, gamma, beta, mask, count, eps):
    """Training-mode BatchNorm1d over the first `count` (real) rows only."""
    xm = x * mask
    mean = jnp.sum(xm, axis=0, keepdims=True) * (1.0 / count)
    diff = (x - mean) * mask
    var = jnp.sum(diff * diff, axis=0, keepdims=True) * (1.0 / count)
    inv = jax.lax.rsqrt(var + eps)
    return (x - mean) * inv * gamma + beta


# ----------------------------------------------------------------------------
# Kernel A: layers 1-2 (tiny), computed once.  Output h2 in bf16 so kernel B's
# inner loop is a pure bf16 MXU stream.
# ----------------------------------------------------------------------------
def fc12_kernel(z_ref,
                w1_ref, b1_ref, g1_ref, be1_ref,
                w2_ref, b2_ref, g2_ref, be2_ref,
                h2_ref, *, batch):
    z = z_ref[...]                                           # (B_PAD, LATENT_PAD)
    row = jax.lax.broadcasted_iota(jnp.int32, (z.shape[0], 1), 0)
    mask = (row < batch).astype(jnp.float32)                 # real-row mask

    h = jnp.dot(z, w1_ref[...], preferred_element_type=jnp.float32) + b1_ref[...]
    h = _bn_train_masked(h, g1_ref[...], be1_ref[...], mask, float(batch), BN_EPS)
    h = _leaky_relu(h, NEG_SLOPE)

    h = jnp.dot(h, w2_ref[...], preferred_element_type=jnp.float32) + b2_ref[...]
    h = _bn_train_masked(h, g2_ref[...], be2_ref[...], mask, float(batch), BN_EPS)
    h = _leaky_relu(h, NEG_SLOPE)

    h2_ref[...] = h.astype(jnp.bfloat16)


# ----------------------------------------------------------------------------
# Kernel B: layer 3, tiled over OUT_DIM.  h2 stays VMEM-resident (constant
# index_map); w3/b3/out tiles stream through the BlockSpec pipeline.
# ----------------------------------------------------------------------------
def fc3_kernel(h2_ref, w3_ref, b3_ref, out_ref):
    acc = jnp.dot(h2_ref[...], w3_ref[...],
                  preferred_element_type=jnp.float32) + b3_ref[...]
    out_ref[...] = jnp.tanh(acc)


@jax.jit
def generator_forward(z, params):
    (w1_pad, b1, g1, be1, w2, b2, g2, be2, w3_bf16, b3) = params
    B = z.shape[0]

    # Layout padding (pure glue): batch -> 8 sublanes, latent -> 128 lanes.
    z_pad = jnp.zeros((B_PAD, LATENT_PAD), jnp.float32).at[:B, :LATENT_DIM].set(z)

    vmem = pl.BlockSpec(memory_space=pltpu.MemorySpace.VMEM)

    # --- Kernel A: layers 1-2, single invocation, all operands VMEM-resident.
    h2 = pl.pallas_call(
        functools.partial(fc12_kernel, batch=B),
        out_shape=jax.ShapeDtypeStruct((B_PAD, H2), jnp.bfloat16),
        in_specs=[vmem] * 9,
        out_specs=vmem,
    )(z_pad, w1_pad, b1, g1, be1, w2, b2, g2, be2)

    # --- Kernel B: layer 3 streamed over OUT_DIM tiles (HBM-bound on w3).
    n_tiles = OUT_DIM // TN
    cost = pl.CostEstimate(
        flops=2 * B_PAD * H2 * OUT_DIM,
        transcendentals=B_PAD * OUT_DIM,
        bytes_accessed=(H2 * OUT_DIM * 2          # w3 (bf16)
                        + OUT_DIM * 4             # b3
                        + B_PAD * H2 * 2          # h2 (bf16)
                        + B_PAD * OUT_DIM * 4),   # output
    )
    flat = pl.pallas_call(
        fc3_kernel,
        out_shape=jax.ShapeDtypeStruct((B_PAD, OUT_DIM), jnp.float32),
        grid=(n_tiles,),
        in_specs=[
            pl.BlockSpec((B_PAD, H2), lambda j: (0, 0)),   # h2 resident
            pl.BlockSpec((H2, TN), lambda j: (0, j)),      # w3 tile stream
            pl.BlockSpec((1, TN), lambda j: (0, j)),       # b3 tile stream
        ],
        out_specs=pl.BlockSpec((B_PAD, TN), lambda j: (0, j)),
        compiler_params=pltpu.CompilerParams(
            dimension_semantics=("parallel",),
            vmem_limit_bytes=48 * 1024 * 1024,
        ),
        cost_estimate=cost,
    )(h2, w3_bf16, b3)

    # .view(B, *input_shape) — drop pad rows, reshape.
    return flat[:B].reshape(B, *INPUT_SHAPE)


# ----------------------------------------------------------------------------
# Parameter init (nn.Linear defaults: U(-1/sqrt(fan_in), 1/sqrt(fan_in));
# BatchNorm gamma=1, beta=0).  Weights stored (in, out); w1 pre-padded to 128
# lanes once here (not per call); w3 stored bf16.
# ----------------------------------------------------------------------------
def init_params(key):
    ks = jax.random.split(key, 6)

    def linear(kw, kb, fan_in, fan_out):
        bound = 1.0 / jnp.sqrt(fan_in)
        w = jax.random.uniform(kw, (fan_in, fan_out), jnp.float32, -bound, bound)
        b = jax.random.uniform(kb, (1, fan_out), jnp.float32, -bound, bound)
        return w, b

    w1, b1 = linear(ks[0], ks[1], LATENT_DIM, H1)
    w2, b2 = linear(ks[2], ks[3], H1, H2)
    w3, b3 = linear(ks[4], ks[5], H2, OUT_DIM)
    g1, be1 = jnp.ones((1, H1), jnp.float32), jnp.zeros((1, H1), jnp.float32)
    g2, be2 = jnp.ones((1, H2), jnp.float32), jnp.zeros((1, H2), jnp.float32)

    w1_pad = jnp.zeros((LATENT_PAD, H1), jnp.float32).at[:LATENT_DIM, :].set(w1)
    # TODO(synk): at v6e use int8 (per-column scales) / at v7x fp8 for w3 for
    # a further 2x cut of the dominant HBM stream.
    return (w1_pad, b1, g1, be1, w2, b2, g2, be2, w3.astype(jnp.bfloat16), b3)


# ----------------------------------------------------------------------------
# Reference (matching precision: h2 rounded to bf16, w3 in bf16 values, f32 dot)
# ----------------------------------------------------------------------------
def _reference_forward(z, params):
    (w1_pad, b1, g1, be1, w2, b2, g2, be2, w3_bf16, b3) = params
    B = z.shape[0]
    ones = jnp.ones((B, 1), jnp.float32)

    h = z @ w1_pad[:LATENT_DIM] + b1
    h = _bn_train_masked(h, g1, be1, ones, float(B), BN_EPS)
    h = _leaky_relu(h, NEG_SLOPE)
    h = h @ w2 + b2
    h = _bn_train_masked(h, g2, be2, ones, float(B), BN_EPS)
    h = _leaky_relu(h, NEG_SLOPE)
    h = h.astype(jnp.bfloat16).astype(jnp.float32)
    h = jnp.tanh(h @ w3_bf16.astype(jnp.float32) + b3)
    return h.reshape(B, *INPUT_SHAPE)


if __name__ == "__main__":
    root = jax.random.PRNGKey(0)
    k_param, k_z = jax.random.split(root)
    params = init_params(k_param)
    z = jax.random.normal(k_z, (BATCH, LATENT_DIM), jnp.float32)

    out = generator_forward(z, params)
    out = jax.block_until_ready(out)

    assert out.shape == (BATCH, *INPUT_SHAPE), out.shape
    ref = _reference_forward(z, params)
    assert jnp.allclose(out, ref, atol=2e-3, rtol=2e-3), (
        float(jnp.max(jnp.abs(out - ref))))

    print("KERNEL_OK")
</pallas_src>

<mosaic_0001>
module attributes {stable_mosaic.version = 11 : i64} {
  func.func @fc3_kernel(%arg0: i32, %arg1: memref<8x256xbf16, #tpu.memory_space<vmem>>, %arg2: memref<256x1024xbf16, #tpu.memory_space<vmem>>, %arg3: memref<1x1024xf32, #tpu.memory_space<vmem>>, %arg4: memref<8x1024xf32, #tpu.memory_space<vmem>>) attributes {dimension_semantics = [#tpu.dimension_semantics<parallel>], iteration_bounds = array<i64: 4>, scalar_prefetch = 0 : i64, scratch_operands = 0 : i64, tpu.core_type = #tpu.core_type<tc>, window_params = [{pipeline_mode = #tpu.pipeline_mode<synchronous>, transform_indices = @transform_0, window_bounds = array<i64: 8, 256>}, {transform_indices = @transform_1, window_bounds = array<i64: 256, 1024>}, {transform_indices = @transform_2, window_bounds = array<i64: 1, 1024>}, {transform_indices = @transform_3, window_bounds = array<i64: 8, 1024>}]} {
    %c0 = arith.constant 0 : index
    %c0_0 = arith.constant 0 : index
    %0 = vector.load %arg1[%c0, %c0_0] : memref<8x256xbf16, #tpu.memory_space<vmem>>, vector<8x256xbf16>
    %c0_1 = arith.constant 0 : index
    %c0_2 = arith.constant 0 : index
    %1 = vector.load %arg2[%c0_1, %c0_2] : memref<256x1024xbf16, #tpu.memory_space<vmem>>, vector<256x1024xbf16>
    %cst = arith.constant dense<0.000000e+00> : vector<8x1024xf32>
    %2 = tpu.matmul %0, %1, %cst {dimension_numbers = #tpu.dot_dimension_numbers<[1], [0], [0], [1], [0, 0, 1, 1], [], []>} : vector<8x256xbf16>, vector<256x1024xbf16>, vector<8x1024xf32> -> vector<8x1024xf32>
    %c0_3 = arith.constant 0 : index
    %c0_4 = arith.constant 0 : index
    %3 = vector.load %arg3[%c0_3, %c0_4] : memref<1x1024xf32, #tpu.memory_space<vmem>>, vector<1x1024xf32>
    %4 = vector.broadcast %3 : vector<1x1024xf32> to vector<8x1024xf32>
    %5 = arith.addf %2, %4 : vector<8x1024xf32>
    %6 = math.tanh %5 : vector<8x1024xf32>
    %c0_5 = arith.constant 0 : index
    %c0_6 = arith.constant 0 : index
    %7 = vector.load %arg4[%c0_5, %c0_6] : memref<8x1024xf32, #tpu.memory_space<vmem>>, vector<8x1024xf32>
    tpu.vector_store %arg4[%c0_5, %c0_6], %6 {strides = array<i32>} : memref<8x1024xf32, #tpu.memory_space<vmem>>, vector<8x1024xf32>,
    return
  }
  func.func @transform_0(%arg0: i32) -> (i32, i32) {
    %c0_i32 = arith.constant 0 : i32
    %c0_i32_0 = arith.constant 0 : i32
    %c0_i32_1 = arith.constant 0 : i32
    return %c0_i32, %c0_i32_0 : i32, i32
  }
  func.func @transform_1(%arg0: i32) -> (i32, i32) {
    %c0_i32 = arith.constant 0 : i32
    %c0_i32_0 = arith.constant 0 : i32
    return %c0_i32, %arg0 : i32, i32
  }
  func.func @transform_2(%arg0: i32) -> (i32, i32) {
    %c0_i32 = arith.constant 0 : i32
    %c0_i32_0 = arith.constant 0 : i32
    return %c0_i32, %arg0 : i32, i32
  }
  func.func @transform_3(%arg0: i32) -> (i32, i32) {
    %c0_i32 = arith.constant 0 : i32
    %c0_i32_0 = arith.constant 0 : i32
    return %c0_i32, %arg0 : i32, i32
  }
}

module attributes {stable_mosaic.version = 11 : i64} {
  func.func @fc12_kernel(%arg0: memref<8x128xf32, #tpu.memory_space<vmem>>, %arg1: memref<128x512xf32, #tpu.memory_space<vmem>>, %arg2: memref<1x512xf32, #tpu.memory_space<vmem>>, %arg3: memref<1x512xf32, #tpu.memory_space<vmem>>, %arg4: memref<1x512xf32, #tpu.memory_space<vmem>>, %arg5: memref<512x256xf32, #tpu.memory_space<vmem>>, %arg6: memref<1x256xf32, #tpu.memory_space<vmem>>, %arg7: memref<1x256xf32, #tpu.memory_space<vmem>>, %arg8: memref<1x256xf32, #tpu.memory_space<vmem>>, %arg9: memref<8x256xbf16, #tpu.memory_space<vmem>>) attributes {dimension_semantics = [], scalar_prefetch = 0 : i64, scratch_operands = 0 : i64, tpu.core_type = #tpu.core_type<tc>} {
    %c0 = arith.constant 0 : index
    %c0_0 = arith.constant 0 : index
    %0 = vector.load %arg0[%c0, %c0_0] : memref<8x128xf32, #tpu.memory_space<vmem>>, vector<8x128xf32>
    %1 = tpu.iota {dimensions = array<i32: 0>} : vector<8x1xi32>
    %c4_i32 = arith.constant 4 : i32
    %2 = vector.broadcast %c4_i32 : i32 to vector<8x1xi32>
    %3 = arith.cmpi slt, %1, %2 : vector<8x1xi32>
    %4 = arith.extui %3 : vector<8x1xi1> to vector<8x1xi32>
    %5 = arith.sitofp %4 : vector<8x1xi32> to vector<8x1xf32>
    %c0_1 = arith.constant 0 : index
    %c0_2 = arith.constant 0 : index
    %6 = vector.load %arg1[%c0_1, %c0_2] : memref<128x512xf32, #tpu.memory_space<vmem>>, vector<128x512xf32>
    %cst = arith.constant dense<0.000000e+00> : vector<8x512xf32>
    %7 = tpu.matmul %0, %6, %cst {dimension_numbers = #tpu.dot_dimension_numbers<[1], [0], [0], [1], [0, 0, 1, 1], [], []>} : vector<8x128xf32>, vector<128x512xf32>, vector<8x512xf32> -> vector<8x512xf32>
    %c0_3 = arith.constant 0 : index
    %c0_4 = arith.constant 0 : index
    %8 = vector.load %arg2[%c0_3, %c0_4] : memref<1x512xf32, #tpu.memory_space<vmem>>, vector<1x512xf32>
    %9 = vector.broadcast %8 : vector<1x512xf32> to vector<8x512xf32>
    %10 = arith.addf %7, %9 : vector<8x512xf32>
    %c0_5 = arith.constant 0 : index
    %c0_6 = arith.constant 0 : index
    %11 = vector.load %arg3[%c0_5, %c0_6] : memref<1x512xf32, #tpu.memory_space<vmem>>, vector<1x512xf32>
    %c0_7 = arith.constant 0 : index
    %c0_8 = arith.constant 0 : index
    %12 = vector.load %arg4[%c0_7, %c0_8] : memref<1x512xf32, #tpu.memory_space<vmem>>, vector<1x512xf32>
    %13 = vector.broadcast %5 : vector<8x1xf32> to vector<8x512xf32>
    %14 = arith.mulf %10, %13 : vector<8x512xf32>
    %cst_9 = arith.constant dense<0.000000e+00> : vector<512xf32>
    %15 = vector.multi_reduction <add>, %14, %cst_9 [0] : vector<8x512xf32> to vector<512xf32>
    %16 = vector.shape_cast %15 : vector<512xf32> to vector<1x512xf32>
    %cst_10 = arith.constant 2.500000e-01 : f32
    %17 = vector.broadcast %cst_10 : f32 to vector<1x512xf32>
    %18 = arith.mulf %16, %17 : vector<1x512xf32>
    %19 = vector.broadcast %18 : vector<1x512xf32> to vector<8x512xf32>
    %20 = arith.subf %10, %19 : vector<8x512xf32>
    %21 = vector.broadcast %5 : vector<8x1xf32> to vector<8x512xf32>
    %22 = arith.mulf %20, %21 : vector<8x512xf32>
    %23 = arith.mulf %22, %22 : vector<8x512xf32>
    %cst_11 = arith.constant dense<0.000000e+00> : vector<512xf32>
    %24 = vector.multi_reduction <add>, %23, %cst_11 [0] : vector<8x512xf32> to vector<512xf32>
    %25 = vector.shape_cast %24 : vector<512xf32> to vector<1x512xf32>
    %cst_12 = arith.constant 2.500000e-01 : f32
    %26 = vector.broadcast %cst_12 : f32 to vector<1x512xf32>
    %27 = arith.mulf %25, %26 : vector<1x512xf32>
    %cst_13 = arith.constant 9.99999974E-6 : f32
    %28 = vector.broadcast %cst_13 : f32 to vector<1x512xf32>
    %29 = arith.addf %27, %28 : vector<1x512xf32>
    %30 = math.rsqrt %29 : vector<1x512xf32>
    %31 = vector.broadcast %18 : vector<1x512xf32> to vector<8x512xf32>
    %32 = arith.subf %10, %31 : vector<8x512xf32>
    %33 = vector.broadcast %30 : vector<1x512xf32> to vector<8x512xf32>
    %34 = arith.mulf %32, %33 : vector<8x512xf32>
    %35 = vector.broadcast %11 : vector<1x512xf32> to vector<8x512xf32>
    %36 = arith.mulf %34, %35 : vector<8x512xf32>
    %37 = vector.broadcast %12 : vector<1x512xf32> to vector<8x512xf32>
    %38 = arith.addf %36, %37 : vector<8x512xf32>
    %cst_14 = arith.constant 0.000000e+00 : f32
    %39 = vector.broadcast %cst_14 : f32 to vector<8x512xf32>
    %40 = arith.cmpf oge, %38, %39 : vector<8x512xf32>
    %cst_15 = arith.constant 2.000000e-01 : f32
    %41 = vector.broadcast %cst_15 : f32 to vector<8x512xf32>
    %42 = arith.mulf %41, %38 : vector<8x512xf32>
    %43 = arith.select %40, %38, %42 : vector<8x512xi1>, vector<8x512xf32>
    %c0_16 = arith.constant 0 : index
    %c0_17 = arith.constant 0 : index
    %44 = vector.load %arg5[%c0_16, %c0_17] : memref<512x256xf32, #tpu.memory_space<vmem>>, vector<512x256xf32>
    %cst_18 = arith.constant dense<0.000000e+00> : vector<8x256xf32>
    %45 = tpu.matmul %43, %44, %cst_18 {dimension_numbers = #tpu.dot_dimension_numbers<[1], [0], [0], [1], [0, 0, 1, 1], [], []>} : vector<8x512xf32>, vector<512x256xf32>, vector<8x256xf32> -> vector<8x256xf32>
    %c0_19 = arith.constant 0 : index
    %c0_20 = arith.constant 0 : index
    %46 = vector.load %arg6[%c0_19, %c0_20] : memref<1x256xf32, #tpu.memory_space<vmem>>, vector<1x256xf32>
    %47 = vector.broadcast %46 : vector<1x256xf32> to vector<8x256xf32>
    %48 = arith.addf %45, %47 : vector<8x256xf32>
    %c0_21 = arith.constant 0 : index
    %c0_22 = arith.constant 0 : index
    %49 = vector.load %arg7[%c0_21, %c0_22] : memref<1x256xf32, #tpu.memory_space<vmem>>, vector<1x256xf32>
    %c0_23 = arith.constant 0 : index
    %c0_24 = arith.constant 0 : index
    %50 = vector.load %arg8[%c0_23, %c0_24] : memref<1x256xf32, #tpu.memory_space<vmem>>, vector<1x256xf32>
    %51 = vector.broadcast %5 : vector<8x1xf32> to vector<8x256xf32>
    %52 = arith.mulf %48, %51 : vector<8x256xf32>
    %cst_25 = arith.constant dense<0.000000e+00> : vector<256xf32>
    %53 = vector.multi_reduction <add>, %52, %cst_25 [0] : vector<8x256xf32> to vector<256xf32>
    %54 = vector.shape_cast %53 : vector<256xf32> to vector<1x256xf32>
    %cst_26 = arith.constant 2.500000e-01 : f32
    %55 = vector.broadcast %cst_26 : f32 to vector<1x256xf32>
    %56 = arith.mulf %54, %55 : vector<1x256xf32>
    %57 = vector.broadcast %56 : vector<1x256xf32> to vector<8x256xf32>
    %58 = arith.subf %48, %57 : vector<8x256xf32>
    %59 = vector.broadcast %5 : vector<8x1xf32> to vector<8x256xf32>
    %60 = arith.mulf %58, %59 : vector<8x256xf32>
    %61 = arith.mulf %60, %60 : vector<8x256xf32>
    %cst_27 = arith.constant dense<0.000000e+00> : vector<256xf32>
    %62 = vector.multi_reduction <add>, %61, %cst_27 [0] : vector<8x256xf32> to vector<256xf32>
    %63 = vector.shape_cast %62 : vector<256xf32> to vector<1x256xf32>
    %cst_28 = arith.constant 2.500000e-01 : f32
    %64 = vector.broadcast %cst_28 : f32 to vector<1x256xf32>
    %65 = arith.mulf %63, %64 : vector<1x256xf32>
    %cst_29 = arith.constant 9.99999974E-6 : f32
    %66 = vector.broadcast %cst_29 : f32 to vector<1x256xf32>
    %67 = arith.addf %65, %66 : vector<1x256xf32>
    %68 = math.rsqrt %67 : vector<1x256xf32>
    %69 = vector.broadcast %56 : vector<1x256xf32> to vector<8x256xf32>
    %70 = arith.subf %48, %69 : vector<8x256xf32>
    %71 = vector.broadcast %68 : vector<1x256xf32> to vector<8x256xf32>
    %72 = arith.mulf %70, %71 : vector<8x256xf32>
    %73 = vector.broadcast %49 : vector<1x256xf32> to vector<8x256xf32>
    %74 = arith.mulf %72, %73 : vector<8x256xf32>
    %75 = vector.broadcast %50 : vector<1x256xf32> to vector<8x256xf32>
    %76 = arith.addf %74, %75 : vector<8x256xf32>
    %cst_30 = arith.constant 0.000000e+00 : f32
    %77 = vector.broadcast %cst_30 : f32 to vector<8x256xf32>
    %78 = arith.cmpf oge, %76, %77 : vector<8x256xf32>
    %cst_31 = arith.constant 2.000000e-01 : f32
    %79 = vector.broadcast %cst_31 : f32 to vector<8x256xf32>
    %80 = arith.mulf %79, %76 : vector<8x256xf32>
    %81 = arith.select %78, %76, %80 : vector<8x256xi1>, vector<8x256xf32>
    %82 = arith.truncf %81 : vector<8x256xf32> to vector<8x256xbf16>
    %c0_32 = arith.constant 0 : index
    %c0_33 = arith.constant 0 : index
    %83 = vector.load %arg9[%c0_32, %c0_33] : memref<8x256xbf16, #tpu.memory_space<vmem>>, vector<8x256xbf16>
    tpu.vector_store %arg9[%c0_32, %c0_33], %82 {strides = array<i32>} : memref<8x256xbf16, #tpu.memory_space<vmem>>, vector<8x256xbf16>,
    return
  }
}

</mosaic_0001>

<llo_original>
// kernel: generator_forward.2
$region0: #{generator_forward.2}
  #allocation0 [shape = 'u32[]', space=smem, size = 0x4, offset = 0x4, fixed_abs, tag = 'smem constant byte address 0x4 - core index']
  #allocation1 [shape = 'u32[72,128]{1,0:T(1,128)}', space=vmem, size = 0x9000, scoped, tag = 'internal scratch']
  %s0 = inlined_call_operand.vmem [shape: f32[8,128], index: 0, kind: input, shape index: {}]
  %s1 = inlined_call_operand.hbm [shape: f32[128,512], index: 1, kind: input, shape index: {}]
  %s2 = inlined_call_operand.hbm [shape: f32[1,512], index: 2, kind: input, shape index: {}]
  %s3 = inlined_call_operand.hbm [shape: f32[1,512], index: 3, kind: input, shape index: {}]
  %s4 = inlined_call_operand.hbm [shape: f32[1,512], index: 4, kind: input, shape index: {}]
  %s5 = inlined_call_operand.hbm [shape: f32[512,256], index: 5, kind: input, shape index: {}]
  %s6 = inlined_call_operand.hbm [shape: f32[1,256], index: 6, kind: input, shape index: {}]
  %s7 = inlined_call_operand.hbm [shape: f32[1,256], index: 7, kind: input, shape index: {}]
  %s8 = inlined_call_operand.hbm [shape: f32[1,256], index: 8, kind: input, shape index: {}]
  %s9 = inlined_call_operand.vmem [shape: bf16[8,256], index: 9, kind: output, shape index: {}]
  %s10 = sld [smem:[#allocation0]]
  $region78: #{generator_forward.2} parent=0
    _
  %s12 = ssub.s32 1, %s10
  %s13 = scalar_select 0, %s12, %s10
  $region1: #{generator_forward.2} parent=0
    #allocation2 [shape = 'u8[262144]{0}', space=vmem, size = 0x40000, scoped, tag = 'input window, operand 1, single buffered']
    #allocation3 [shape = 's32[1]{0}', space=sflag, size = 0x4, scoped, tag = 'scoped memory for generator_forward.2']
    #allocation4 [shape = 'u8[2048]{0}', space=vmem, size = 0x800, scoped, tag = 'input window, operand 2, single buffered']
    #allocation5 [shape = 's32[1]{0}', space=sflag, size = 0x4, scoped, tag = 'scoped memory for generator_forward.2']
    #allocation6 [shape = 'u8[2048]{0}', space=vmem, size = 0x800, scoped, tag = 'input window, operand 3, single buffered']
    #allocation7 [shape = 'u8[2048]{0}', space=vmem, size = 0x800, scoped, tag = 'input window, operand 4, single buffered']
    #allocation8 [shape = 's32[1]{0}', space=sflag, size = 0x4, scoped, tag = 'scoped memory for generator_forward.2']
    #allocation9 [shape = 'u8[524288]{0}', space=vmem, size = 0x80000, scoped, tag = 'input window, operand 5, single buffered']
    #allocation10 [shape = 'u8[1024]{0}', space=vmem, size = 0x400, scoped, tag = 'input window, operand 6, single buffered']
    #allocation11 [shape = 's32[1]{0}', space=sflag, size = 0x4, scoped, tag = 'scoped memory for generator_forward.2']
    #allocation12 [shape = 'u8[1024]{0}', space=vmem, size = 0x400, scoped, tag = 'input window, operand 7, single buffered']
    #allocation13 [shape = 'u8[1024]{0}', space=vmem, size = 0x400, scoped, tag = 'input window, operand 8, single buffered']
    #allocation14 [shape = 's32[1]{0}', space=sflag, size = 0x4, scoped, tag = 'scoped memory for generator_forward.2']
    %14 = vsyncpa [#allocation3], 0
    %15 = vsyncpa [#allocation5], 0
    %16 = vsyncpa [#allocation8], 0
    %17 = vsyncpa [#allocation11], 0
    %18 = vsyncpa [#allocation14], 0
    // Predicated region
    $region2: #{generator_forward.2} parent=1 // pred_check
      _
    $region3: #{generator_forward.2} parent=1 // pred_check_branch
      %20 = sbr.rel (0) target = $region5
    $region4: #{generator_forward.2} parent=1 // pred_region
      _
    $region5: #{generator_forward.2} parent=1 // pred_fallthru
      _
    // Predicated region
    $region6: #{generator_forward.2} parent=1 // pred_check
      _
    $region7: #{generator_forward.2} parent=1 // pred_check_branch
      %22 = sbr.rel (0) target = $region9
    $region8: #{generator_forward.2} parent=1 // pred_region
      %24 = vsyncadd [#allocation3], 0
      %s25 = sshll.u32 %s1, 4
      %s26 = int_to_ptr.hbm [resolvable:$true] %s25
      %s27 = sshll.u32 [#allocation2], 4
      %s28 = int_to_ptr.vmem [resolvable:$true] %s27
      %33 = dma.hbm_to_vmem [thread:$0]  %s26, 8192, %s28, [#allocation3], 512, 512, 32
    $region9: #{generator_forward.2} parent=1 // pred_fallthru
      _
    // Predicated region
    $region10: #{generator_forward.2} parent=1 // pred_check
      _
    $region11: #{generator_forward.2} parent=1 // pred_check_branch
      %35 = sbr.rel (0) target = $region13
    $region12: #{generator_forward.2} parent=1 // pred_region
      %37 = vsyncadd [#allocation5], 0
      %s39 = sshll.u32 %s2, 4
      %s40 = int_to_ptr.hbm [resolvable:$true] %s39
      %s41 = sshll.u32 [#allocation4], 4
      %s42 = int_to_ptr.vmem [resolvable:$true] %s41
      %44 = dma.hbm_to_vmem [thread:$0]  %s40, 64, %s42, [#allocation5]
    $region13: #{generator_forward.2} parent=1 // pred_fallthru
      _
    // Predicated region
    $region14: #{generator_forward.2} parent=1 // pred_check
      _
    $region15: #{generator_forward.2} parent=1 // pred_check_branch
      %46 = sbr.rel (0) target = $region17
    $region16: #{generator_forward.2} parent=1 // pred_region
      %48 = vsyncadd [#allocation5], 0
      %s50 = sshll.u32 %s3, 4
      %s51 = int_to_ptr.hbm [resolvable:$true] %s50
      %s52 = sshll.u32 [#allocation6], 4
      %s53 = int_to_ptr.vmem [resolvable:$true] %s52
      %55 = dma.hbm_to_vmem [thread:$0]  %s51, 64, %s53, [#allocation5]
    $region17: #{generator_forward.2} parent=1 // pred_fallthru
      _
    // Predicated region
    $region18: #{generator_forward.2} parent=1 // pred_check
      _
    $region19: #{generator_forward.2} parent=1 // pred_check_branch
      %57 = sbr.rel (0) target = $region21
    $region20: #{generator_forward.2} parent=1 // pred_region
      %59 = vsyncadd [#allocation8], 0
      %s61 = sshll.u32 %s4, 4
      %s62 = int_to_ptr.hbm [resolvable:$true] %s61
      %s63 = sshll.u32 [#allocation7], 4
      %s64 = int_to_ptr.vmem [resolvable:$true] %s63
      %66 = dma.hbm_to_vmem [thread:$0]  %s62, 64, %s64, [#allocation8]
    $region21: #{generator_forward.2} parent=1 // pred_fallthru
      _
    // Predicated region
    $region22: #{generator_forward.2} parent=1 // pred_check
      _
    $region23: #{generator_forward.2} parent=1 // pred_check_branch
      %68 = sbr.rel (0) target = $region25
    $region24: #{generator_forward.2} parent=1 // pred_region
      %70 = vsyncadd [#allocation8], 0
      %s71 = sshll.u32 %s5, 4
      %s72 = int_to_ptr.hbm [resolvable:$true] %s71
      %s73 = sshll.u32 [#allocation9], 4
      %s74 = int_to_ptr.vmem [resolvable:$true] %s73
      %79 = dma.hbm_to_vmem [thread:$0]  %s72, 16384, %s74, [#allocation8], 256, 256, 16
    $region25: #{generator_forward.2} parent=1 // pred_fallthru
      _
    // Predicated region
    $region26: #{generator_forward.2} parent=1 // pred_check
      _
    $region27: #{generator_forward.2} parent=1 // pred_check_branch
      %81 = sbr.rel (0) target = $region29
    $region28: #{generator_forward.2} parent=1 // pred_region
      %83 = vsyncadd [#allocation11], 0
      %s85 = sshll.u32 %s6, 4
      %s86 = int_to_ptr.hbm [resolvable:$true] %s85
      %s87 = sshll.u32 [#allocation10], 4
      %s88 = int_to_ptr.vmem [resolvable:$true] %s87
      %90 = dma.hbm_to_vmem [thread:$0]  %s86, 32, %s88, [#allocation11]
    $region29: #{generator_forward.2} parent=1 // pred_fallthru
      _
    // Predicated region
    $region30: #{generator_forward.2} parent=1 // pred_check
      _
    $region31: #{generator_forward.2} parent=1 // pred_check_branch
      %92 = sbr.rel (0) target = $region33
    $region32: #{generator_forward.2} parent=1 // pred_region
      %94 = vsyncadd [#allocation11], 0
      %s96 = sshll.u32 %s7, 4
      %s97 = int_to_ptr.hbm [resolvable:$true] %s96
      %s98 = sshll.u32 [#allocation12], 4
      %s99 = int_to_ptr.vmem [resolvable:$true] %s98
      %101 = dma.hbm_to_vmem [thread:$0]  %s97, 32, %s99, [#allocation11]
    $region33: #{generator_forward.2} parent=1 // pred_fallthru
      _
    // Predicated region
    $region34: #{generator_forward.2} parent=1 // pred_check
      _
    $region35: #{generator_forward.2} parent=1 // pred_check_branch
      %103 = sbr.rel (0) target = $region37
    $region36: #{generator_forward.2} parent=1 // pred_region
      %105 = vsyncadd [#allocation14], 0
      %s107 = sshll.u32 %s8, 4
      %s108 = int_to_ptr.hbm [resolvable:$true] %s107
      %s109 = sshll.u32 [#allocation13], 4
      %s110 = int_to_ptr.vmem [resolvable:$true] %s109
      %112 = dma.hbm_to_vmem [thread:$0]  %s108, 32, %s110, [#allocation14]
    $region37: #{generator_forward.2} parent=1 // pred_fallthru
      _
    // Predicated region
    $region38: #{generator_forward.2} parent=1 // pred_check
      _
    $region39: #{generator_forward.2} parent=1 // pred_check_branch
      %114 = sbr.rel (0) target = $region41
    $region40: #{generator_forward.2} parent=1 // pred_region
      %116 = dma.done [#allocation3], 8192
    $region41: #{generator_forward.2} parent=1 // pred_fallthru
      _
    // Predicated region
    $region42: #{generator_forward.2} parent=1 // pred_check
      _
    $region43: #{generator_forward.2} parent=1 // pred_check_branch
      %118 = sbr.rel (0) target = $region45
    $region44: #{generator_forward.2} parent=1 // pred_region
      %120 = dma.done [#allocation5], 64
    $region45: #{generator_forward.2} parent=1 // pred_fallthru
      _
    // Predicated region
    $region46: #{generator_forward.2} parent=1 // pred_check
      _
    $region47: #{generator_forward.2} parent=1 // pred_check_branch
      %122 = sbr.rel (0) target = $region49
    $region48: #{generator_forward.2} parent=1 // pred_region
      %124 = dma.done [#allocation5], 64
    $region49: #{generator_forward.2} parent=1 // pred_fallthru
      _
    // Predicated region
    $region50: #{generator_forward.2} parent=1 // pred_check
      _
    $region51: #{generator_forward.2} parent=1 // pred_check_branch
      %126 = sbr.rel (0) target = $region53
    $region52: #{generator_forward.2} parent=1 // pred_region
      %128 = dma.done [#allocation8], 64
    $region53: #{generator_forward.2} parent=1 // pred_fallthru
      _
    // Predicated region
    $region54: #{generator_forward.2} parent=1 // pred_check
      _
    $region55: #{generator_forward.2} parent=1 // pred_check_branch
      %130 = sbr.rel (0) target = $region57
    $region56: #{generator_forward.2} parent=1 // pred_region
      %132 = dma.done [#allocation8], 16384
    $region57: #{generator_forward.2} parent=1 // pred_fallthru
      _
    // Predicated region
    $region58: #{generator_forward.2} parent=1 // pred_check
      _
    $region59: #{generator_forward.2} parent=1 // pred_check_branch
      %134 = sbr.rel (0) target = $region61
    $region60: #{generator_forward.2} parent=1 // pred_region
      %136 = dma.done [#allocation11], 32
    $region61: #{generator_forward.2} parent=1 // pred_fallthru
      _
    // Predicated region
    $region62: #{generator_forward.2} parent=1 // pred_check
      _
    $region63: #{generator_forward.2} parent=1 // pred_check_branch
      %138 = sbr.rel (0) target = $region65
    $region64: #{generator_forward.2} parent=1 // pred_region
      %140 = dma.done [#allocation11], 32
    $region65: #{generator_forward.2} parent=1 // pred_fallthru
      _
    // Predicated region
    $region66: #{generator_forward.2} parent=1 // pred_check
      _
    $region67: #{generator_forward.2} parent=1 // pred_check_branch
      %142 = sbr.rel (0) target = $region69
    $region68: #{generator_forward.2} parent=1 // pred_region
      %144 = dma.done [#allocation14], 32
    $region69: #{generator_forward.2} parent=1 // pred_fallthru
      _
    %v145 = vld [vmem:[%s0] sm:$0xff]
    %v146 = vlaneseq
    %v147 = vshrl.u32 %v146, 7
    %vm148 = vcmp.lt.s32.totalorder %v147, 4
    %v149 = vsel %vm148, 1, 0
    %v150 = vcvt.s32.f32 %v149
    %v151 = vld [vmem:[#allocation2] sm:$0xff]
    %v152 = vld [vmem:[#allocation2 + $0x8] sm:$0xff]
    %v153 = vld [vmem:[#allocation2 + $0x10] sm:$0xff]
    %v154 = vld [vmem:[#allocation2 + $0x18] sm:$0xff]
    %v155 = vld [vmem:[#allocation2 + $0x20] sm:$0xff]
    %v156 = vld [vmem:[#allocation2 + $0x28] sm:$0xff]
    %v157 = vld [vmem:[#allocation2 + $0x30] sm:$0xff]
    %v158 = vld [vmem:[#allocation2 + $0x38] sm:$0xff]
    %v159 = vld [vmem:[#allocation2 + $0x40] sm:$0xff]
    %v160 = vld [vmem:[#allocation2 + $0x48] sm:$0xff]
    %v161 = vld [vmem:[#allocation2 + $0x50] sm:$0xff]
    %v162 = vld [vmem:[#allocation2 + $0x58] sm:$0xff]
    %v163 = vld [vmem:[#allocation2 + $0x60] sm:$0xff]
    %v164 = vld [vmem:[#allocation2 + $0x68] sm:$0xff]
    %v165 = vld [vmem:[#allocation2 + $0x70] sm:$0xff]
    %v166 = vld [vmem:[#allocation2 + $0x78] sm:$0xff]
    %v167 = vld [vmem:[#allocation2 + $0x80] sm:$0xff]
    %v168 = vld [vmem:[#allocation2 + $0x88] sm:$0xff]
    %v169 = vld [vmem:[#allocation2 + $0x90] sm:$0xff]
    %v170 = vld [vmem:[#allocation2 + $0x98] sm:$0xff]
    %v171 = vld [vmem:[#allocation2 + $0xa0] sm:$0xff]
    %v172 = vld [vmem:[#allocation2 + $0xa8] sm:$0xff]
    %v173 = vld [vmem:[#allocation2 + $0xb0] sm:$0xff]
    %v174 = vld [vmem:[#allocation2 + $0xb8] sm:$0xff]
    %v175 = vld [vmem:[#allocation2 + $0xc0] sm:$0xff]
    %v176 = vld [vmem:[#allocation2 + $0xc8] sm:$0xff]
    %v177 = vld [vmem:[#allocation2 + $0xd0] sm:$0xff]
    %v178 = vld [vmem:[#allocation2 + $0xd8] sm:$0xff]
    %v179 = vld [vmem:[#allocation2 + $0xe0] sm:$0xff]
    %v180 = vld [vmem:[#allocation2 + $0xe8] sm:$0xff]
    %v181 = vld [vmem:[#allocation2 + $0xf0] sm:$0xff]
    %v182 = vld [vmem:[#allocation2 + $0xf8] sm:$0xff]
    %v183 = vld [vmem:[#allocation2 + $0x100] sm:$0xff]
    %v184 = vld [vmem:[#allocation2 + $0x108] sm:$0xff]
    %v185 = vld [vmem:[#allocation2 + $0x110] sm:$0xff]
    %v186 = vld [vmem:[#allocation2 + $0x118] sm:$0xff]
    %v187 = vld [vmem:[#allocation2 + $0x120] sm:$0xff]
    %v188 = vld [vmem:[#allocation2 + $0x128] sm:$0xff]
    %v189 = vld [vmem:[#allocation2 + $0x130] sm:$0xff]
    %v190 = vld [vmem:[#allocation2 + $0x138] sm:$0xff]
    %v191 = vld [vmem:[#allocation2 + $0x140] sm:$0xff]
    %v192 = vld [vmem:[#allocation2 + $0x148] sm:$0xff]
    %v193 = vld [vmem:[#allocation2 + $0x150] sm:$0xff]
    %v194 = vld [vmem:[#allocation2 + $0x158] sm:$0xff]
    %v195 = vld [vmem:[#allocation2 + $0x160] sm:$0xff]
    %v196 = vld [vmem:[#allocation2 + $0x168] sm:$0xff]
    %v197 = vld [vmem:[#allocation2 + $0x170] sm:$0xff]
    %v198 = vld [vmem:[#allocation2 + $0x178] sm:$0xff]
    %v199 = vld [vmem:[#allocation2 + $0x180] sm:$0xff]
    %v200 = vld [vmem:[#allocation2 + $0x188] sm:$0xff]
    %v201 = vld [vmem:[#allocation2 + $0x190] sm:$0xff]
    %v202 = vld [vmem:[#allocation2 + $0x198] sm:$0xff]
    %v203 = vld [vmem:[#allocation2 + $0x1a0] sm:$0xff]
    %v204 = vld [vmem:[#allocation2 + $0x1a8] sm:$0xff]
    %v205 = vld [vmem:[#allocation2 + $0x1b0] sm:$0xff]
    %v206 = vld [vmem:[#allocation2 + $0x1b8] sm:$0xff]
    %v207 = vld [vmem:[#allocation2 + $0x1c0] sm:$0xff]
    %v208 = vld [vmem:[#allocation2 + $0x1c8] sm:$0xff]
    %v209 = vld [vmem:[#allocation2 + $0x1d0] sm:$0xff]
    %v210 = vld [vmem:[#allocation2 + $0x1d8] sm:$0xff]
    %v211 = vld [vmem:[#allocation2 + $0x1e0] sm:$0xff]
    %v212 = vld [vmem:[#allocation2 + $0x1e8] sm:$0xff]
    %v213 = vld [vmem:[#allocation2 + $0x1f0] sm:$0xff]
    %v214 = vld [vmem:[#allocation2 + $0x1f8] sm:$0xff]
    %v215 = vld [vmem:[#allocation4] sm:$0xf]
    %v217 = vperm.slane %v215, 0
    %v218 = vperm.slane %v215, 1
    %v219 = vperm.slane %v215, 2
    %v220 = vperm.slane %v215, 3
    %225 = vmatpush.msra.mxu0 %v211
    %226 = vmatpush.msra.mxu0 %v207
    %227 = vmatpush.msra.mxu0 %v203
    %228 = vmatpush.msra.mxu0 %v199
    %229 = vmatpush.msra.mxu0 %v195
    %230 = vmatpush.msra.mxu0 %v191
    %231 = vmatpush.msra.mxu0 %v187
    %232 = vmatpush.msra.mxu0 %v183
    %233 = vmatpush.msra.mxu0 %v179
    %234 = vmatpush.msra.mxu0 %v175
    %235 = vmatpush.msra.mxu0 %v171
    %236 = vmatpush.msra.mxu0 %v167
    %237 = vmatpush.msra.mxu0 %v163
    %238 = vmatpush.msra.mxu0 %v159
    %239 = vmatpush.msra.mxu0 %v155
    %240 = vmatpush.msra.mxu0 %v151
    %241 = vmatmul.f32.gmra.mxu0 %v145
    %v242 = vpop.f32.mrf.mxu0
    %v243 = vadd.f32 %v217, %v242
    %244 = vdwg.mxu0
    %245 = vmatpush.msra.mxu0 %v212
    %246 = vmatpush.msra.mxu0 %v208
    %247 = vmatpush.msra.mxu0 %v204
    %248 = vmatpush.msra.mxu0 %v200
    %249 = vmatpush.msra.mxu0 %v196
    %250 = vmatpush.msra.mxu0 %v192
    %251 = vmatpush.msra.mxu0 %v188
    %252 = vmatpush.msra.mxu0 %v184
    %253 = vmatpush.msra.mxu0 %v180
    %254 = vmatpush.msra.mxu0 %v176
    %255 = vmatpush.msra.mxu0 %v172
    %256 = vmatpush.msra.mxu0 %v168
    %257 = vmatpush.msra.mxu0 %v164
    %258 = vmatpush.msra.mxu0 %v160
    %259 = vmatpush.msra.mxu0 %v156
    %260 = vmatpush.msra.mxu0 %v152
    %261 = vmatmul.f32.gmra.mxu0 %v145
    %v262 = vpop.f32.mrf.mxu0
    %v263 = vadd.f32 %v218, %v262
    %264 = vdwg.mxu0
    %265 = vmatpush.msra.mxu0 %v213
    %266 = vmatpush.msra.mxu0 %v209
    %267 = vmatpush.msra.mxu0 %v205
    %268 = vmatpush.msra.mxu0 %v201
    %269 = vmatpush.msra.mxu0 %v197
    %270 = vmatpush.msra.mxu0 %v193
    %271 = vmatpush.msra.mxu0 %v189
    %272 = vmatpush.msra.mxu0 %v185
    %273 = vmatpush.msra.mxu0 %v181
    %274 = vmatpush.msra.mxu0 %v177
    %275 = vmatpush.msra.mxu0 %v173
    %276 = vmatpush.msra.mxu0 %v169
    %277 = vmatpush.msra.mxu0 %v165
    %278 = vmatpush.msra.mxu0 %v161
    %279 = vmatpush.msra.mxu0 %v157
    %280 = vmatpush.msra.mxu0 %v153
    %281 = vmatmul.f32.gmra.mxu0 %v145
    %v282 = vpop.f32.mrf.mxu0
    %v283 = vadd.f32 %v219, %v282
    %284 = vdwg.mxu0
    %285 = vmatpush.msra.mxu0 %v214
    %286 = vmatpush.msra.mxu0 %v210
    %287 = vmatpush.msra.mxu0 %v206
    %288 = vmatpush.msra.mxu0 %v202
    %289 = vmatpush.msra.mxu0 %v198
    %290 = vmatpush.msra.mxu0 %v194
    %291 = vmatpush.msra.mxu0 %v190
    %292 = vmatpush.msra.mxu0 %v186
    %293 = vmatpush.msra.mxu0 %v182
    %294 = vmatpush.msra.mxu0 %v178
    %295 = vmatpush.msra.mxu0 %v174
    %296 = vmatpush.msra.mxu0 %v170
    %297 = vmatpush.msra.mxu0 %v166
    %298 = vmatpush.msra.mxu0 %v162
    %299 = vmatpush.msra.mxu0 %v158
    %300 = vmatpush.msra.mxu0 %v154
    %301 = vmatmul.f32.gmra.mxu0 %v145
    %v302 = vpop.f32.mrf.mxu0
    %v303 = vadd.f32 %v220, %v302
    %304 = vdwg.mxu0
    %v305 = vld [vmem:[#allocation6] sm:$0xf]
    %v306 = vld [vmem:[#allocation7] sm:$0xf]
    %v307 = vmul.f32 %v243, %v150
    %v308 = vmul.f32 %v263, %v150
    %v309 = vmul.f32 %v283, %v150
    %v310 = vmul.f32 %v303, %v150
    %v311 = vrot.slane %v307, 4
    %v312 = vadd.f32 %v307, %v311
    %v313 = vrot.slane %v312, 2
    %v314 = vadd.f32 %v312, %v313
    %v315 = vrot.slane %v314, 1
    %v316 = vadd.f32 %v314, %v315
    %v317 = vrot.slane %v308, 4
    %v318 = vadd.f32 %v308, %v317
    %v319 = vrot.slane %v318, 2
    %v320 = vadd.f32 %v318, %v319
    %v321 = vrot.slane %v320, 1
    %v322 = vadd.f32 %v320, %v321
    %v323 = vrot.slane %v309, 4
    %v324 = vadd.f32 %v309, %v323
    %v325 = vrot.slane %v324, 2
    %v326 = vadd.f32 %v324, %v325
    %v327 = vrot.slane %v326, 1
    %v328 = vadd.f32 %v326, %v327
    %v329 = vrot.slane %v310, 4
    %v330 = vadd.f32 %v310, %v329
    %v331 = vrot.slane %v330, 2
    %v332 = vadd.f32 %v330, %v331
    %v333 = vrot.slane %v332, 1
    %v334 = vadd.f32 %v332, %v333
    %v335 = vmul.f32 %v316, 0.25
    %v336 = vmul.f32 %v322, 0.25
    %v337 = vmul.f32 %v328, 0.25
    %v338 = vmul.f32 %v334, 0.25
    %v339 = vsub.f32 %v243, %v335
    %v340 = vsub.f32 %v263, %v336
    %v341 = vsub.f32 %v283, %v337
    %v342 = vsub.f32 %v303, %v338
    %v343 = vmul.f32 %v339, %v150
    %v344 = vmul.f32 %v340, %v150
    %v345 = vmul.f32 %v341, %v150
    %v346 = vmul.f32 %v342, %v150
    %v347 = vmul.f32 %v343, %v343
    %v348 = vmul.f32 %v344, %v344
    %v349 = vmul.f32 %v345, %v345
    %v350 = vmul.f32 %v346, %v346
    %v351 = vrot.slane %v347, 4
    %v352 = vadd.f32 %v347, %v351
    %v353 = vrot.slane %v352, 2
    %v354 = vadd.f32 %v352, %v353
    %v355 = vrot.slane %v354, 1
    %v356 = vadd.f32 %v354, %v355
    %v357 = vrot.slane %v348, 4
    %v358 = vadd.f32 %v348, %v357
    %v359 = vrot.slane %v358, 2
    %v360 = vadd.f32 %v358, %v359
    %v361 = vrot.slane %v360, 1
    %v362 = vadd.f32 %v360, %v361
    %v363 = vrot.slane %v349, 4
    %v364 = vadd.f32 %v349, %v363
    %v365 = vrot.slane %v364, 2
    %v366 = vadd.f32 %v364, %v365
    %v367 = vrot.slane %v366, 1
    %v368 = vadd.f32 %v366, %v367
    %v369 = vrot.slane %v350, 4
    %v370 = vadd.f32 %v350, %v369
    %v371 = vrot.slane %v370, 2
    %v372 = vadd.f32 %v370, %v371
    %v373 = vrot.slane %v372, 1
    %v374 = vadd.f32 %v372, %v373
    %v375 = vmul.f32 %v356, 0.25
    %v376 = vmul.f32 %v362, 0.25
    %v377 = vmul.f32 %v368, 0.25
    %v378 = vmul.f32 %v374, 0.25
    %v379 = vadd.f32 %v375, 1e-05
    %v380 = vadd.f32 %v376, 1e-05
    %v381 = vadd.f32 %v377, 1e-05
    %v382 = vadd.f32 %v378, 1e-05
    %v383 = vrsqrt.pop %v379
    %v384 = vmul.f32 %v383, %v379
    %v385 = vmul.f32 %v384, %v383
    %v386 = vmul.f32 0.5, %v385
    %v387 = vsub.f32 1.5, %v386
    %v388 = vmul.f32 %v383, %v387
    %vm389 = vweird.f32 %v379
    %vm390 = vweird.f32 %v383
    %vm391 = vmor %vm389, %vm390
    %v392 = vsel %vm391, %v383, %v388
    %v393 = vrsqrt.pop %v380
    %v394 = vmul.f32 %v393, %v380
    %v395 = vmul.f32 %v394, %v393
    %v396 = vmul.f32 0.5, %v395
    %v397 = vsub.f32 1.5, %v396
    %v398 = vmul.f32 %v393, %v397
    %vm399 = vweird.f32 %v380
    %vm400 = vweird.f32 %v393
    %vm401 = vmor %vm399, %vm400
    %v402 = vsel %vm401, %v393, %v398
    %v403 = vrsqrt.pop %v381
    %v404 = vmul.f32 %v403, %v381
    %v405 = vmul.f32 %v404, %v403
    %v406 = vmul.f32 0.5, %v405
    %v407 = vsub.f32 1.5, %v406
    %v408 = vmul.f32 %v403, %v407
    %vm409 = vweird.f32 %v381
    %vm410 = vweird.f32 %v403
    %vm411 = vmor %vm409, %vm410
    %v412 = vsel %vm411, %v403, %v408
    %v413 = vrsqrt.pop %v382
    %v414 = vmul.f32 %v413, %v382
    %v415 = vmul.f32 %v414, %v413
    %v416 = vmul.f32 0.5, %v415
    %v417 = vsub.f32 1.5, %v416
    %v418 = vmul.f32 %v413, %v417
    %vm419 = vweird.f32 %v382
    %vm420 = vweird.f32 %v413
    %vm421 = vmor %vm419, %vm420
    %v422 = vsel %vm421, %v413, %v418
    %v423 = vmul.f32 %v339, %v392
    %v424 = vmul.f32 %v340, %v402
    %v425 = vmul.f32 %v341, %v412
    %v426 = vmul.f32 %v342, %v422
    %v428 = vperm.slane %v305, 0
    %v429 = vperm.slane %v305, 1
    %v430 = vperm.slane %v305, 2
    %v431 = vperm.slane %v305, 3
    %v436 = vmul.f32 %v423, %v428
    %v437 = vmul.f32 %v424, %v429
    %v438 = vmul.f32 %v425, %v430
    %v439 = vmul.f32 %v426, %v431
    %v441 = vperm.slane %v306, 0
    %v442 = vperm.slane %v306, 1
    %v443 = vperm.slane %v306, 2
    %v444 = vperm.slane %v306, 3
    %v449 = vadd.f32 %v436, %v441
    %v450 = vadd.f32 %v437, %v442
    %v451 = vadd.f32 %v438, %v443
    %v452 = vadd.f32 %v439, %v444
    %vm453 = vcmp.ge.f32.partialorder %v449, 0.0
    %vm454 = vcmp.ge.f32.partialorder %v450, 0.0
    %vm455 = vcmp.ge.f32.partialorder %v451, 0.0
    %vm456 = vcmp.ge.f32.partialorder %v452, 0.0
    %v457 = vmul.f32 %v449, 0.2
    %v458 = vmul.f32 %v450, 0.2
    %v459 = vmul.f32 %v451, 0.2
    %v460 = vmul.f32 %v452, 0.2
    %v461 = vsel %vm453, %v449, %v457
    %v462 = vsel %vm454, %v450, %v458
    %v463 = vsel %vm455, %v451, %v459
    %v464 = vsel %vm456, %v452, %v460
    %v465 = vld [vmem:[#allocation9] sm:$0xff]
    %v466 = vld [vmem:[#allocation9 + $0x8] sm:$0xff]
    %v467 = vld [vmem:[#allocation9 + $0x10] sm:$0xff]
    %v468 = vld [vmem:[#allocation9 + $0x18] sm:$0xff]
    %v469 = vld [vmem:[#allocation9 + $0x20] sm:$0xff]
    %v470 = vld [vmem:[#allocation9 + $0x28] sm:$0xff]
    %v471 = vld [vmem:[#allocation9 + $0x30] sm:$0xff]
    %v472 = vld [vmem:[#allocation9 + $0x38] sm:$0xff]
    %v473 = vld [vmem:[#allocation9 + $0x40] sm:$0xff]
    %v474 = vld [vmem:[#allocation9 + $0x48] sm:$0xff]
    %v475 = vld [vmem:[#allocation9 + $0x50] sm:$0xff]
    %v476 = vld [vmem:[#allocation9 + $0x58] sm:$0xff]
    %v477 = vld [vmem:[#allocation9 + $0x60] sm:$0xff]
    %v478 = vld [vmem:[#allocation9 + $0x68] sm:$0xff]
    %v479 = vld [vmem:[#allocation9 + $0x70] sm:$0xff]
    %v480 = vld [vmem:[#allocation9 + $0x78] sm:$0xff]
    %v481 = vld [vmem:[#allocation9 + $0x80] sm:$0xff]
    %v482 = vld [vmem:[#allocation9 + $0x88] sm:$0xff]
    %v483 = vld [vmem:[#allocation9 + $0x90] sm:$0xff]
    %v484 = vld [vmem:[#allocation9 + $0x98] sm:$0xff]
    %v485 = vld [vmem:[#allocation9 + $0xa0] sm:$0xff]
    %v486 = vld [vmem:[#allocation9 + $0xa8] sm:$0xff]
    %v487 = vld [vmem:[#allocation9 + $0xb0] sm:$0xff]
    %v488 = vld [vmem:[#allocation9 + $0xb8] sm:$0xff]
    %v489 = vld [vmem:[#allocation9 + $0xc0] sm:$0xff]
    %v490 = vld [vmem:[#allocation9 + $0xc8] sm:$0xff]
    %v491 = vld [vmem:[#allocation9 + $0xd0] sm:$0xff]
    %v492 = vld [vmem:[#allocation9 + $0xd8] sm:$0xff]
    %v493 = vld [vmem:[#allocation9 + $0xe0] sm:$0xff]
    %v494 = vld [vmem:[#allocation9 + $0xe8] sm:$0xff]
    %v495 = vld [vmem:[#allocation9 + $0xf0] sm:$0xff]
    %v496 = vld [vmem:[#allocation9 + $0xf8] sm:$0xff]
    %v497 = vld [vmem:[#allocation9 + $0x100] sm:$0xff]
    %v498 = vld [vmem:[#allocation9 + $0x108] sm:$0xff]
    %v499 = vld [vmem:[#allocation9 + $0x110] sm:$0xff]
    %v500 = vld [vmem:[#allocation9 + $0x118] sm:$0xff]
    %v501 = vld [vmem:[#allocation9 + $0x120] sm:$0xff]
    %v502 = vld [vmem:[#allocation9 + $0x128] sm:$0xff]
    %v503 = vld [vmem:[#allocation9 + $0x130] sm:$0xff]
    %v504 = vld [vmem:[#allocation9 + $0x138] sm:$0xff]
    %v505 = vld [vmem:[#allocation9 + $0x140] sm:$0xff]
    %v506 = vld [vmem:[#allocation9 + $0x148] sm:$0xff]
    %v507 = vld [vmem:[#allocation9 + $0x150] sm:$0xff]
    %v508 = vld [vmem:[#allocation9 + $0x158] sm:$0xff]
    %v509 = vld [vmem:[#allocation9 + $0x160] sm:$0xff]
    %v510 = vld [vmem:[#allocation9 + $0x168] sm:$0xff]
    %v511 = vld [vmem:[#allocation9 + $0x170] sm:$0xff]
    %v512 = vld [vmem:[#allocation9 + $0x178] sm:$0xff]
    %v513 = vld [vmem:[#allocation9 + $0x180] sm:$0xff]
    %v514 = vld [vmem:[#allocation9 + $0x188] sm:$0xff]
    %v515 = vld [vmem:[#allocation9 + $0x190] sm:$0xff]
    %v516 = vld [vmem:[#allocation9 + $0x198] sm:$0xff]
    %v517 = vld [vmem:[#allocation9 + $0x1a0] sm:$0xff]
    %v518 = vld [vmem:[#allocation9 + $0x1a8] sm:$0xff]
    %v519 = vld [vmem:[#allocation9 + $0x1b0] sm:$0xff]
    %v520 = vld [vmem:[#allocation9 + $0x1b8] sm:$0xff]
    %v521 = vld [vmem:[#allocation9 + $0x1c0] sm:$0xff]
    %v522 = vld [vmem:[#allocation9 + $0x1c8] sm:$0xff]
    %v523 = vld [vmem:[#allocation9 + $0x1d0] sm:$0xff]
    %v524 = vld [vmem:[#allocation9 + $0x1d8] sm:$0xff]
    %v525 = vld [vmem:[#allocation9 + $0x1e0] sm:$0xff]
    %v526 = vld [vmem:[#allocation9 + $0x1e8] sm:$0xff]
    %v527 = vld [vmem:[#allocation9 + $0x1f0] sm:$0xff]
    %v528 = vld [vmem:[#allocation9 + $0x1f8] sm:$0xff]
    %v529 = vld [vmem:[#allocation9 + $0x200] sm:$0xff]
    %v530 = vld [vmem:[#allocation9 + $0x208] sm:$0xff]
    %v531 = vld [vmem:[#allocation9 + $0x210] sm:$0xff]
    %v532 = vld [vmem:[#allocation9 + $0x218] sm:$0xff]
    %v533 = vld [vmem:[#allocation9 + $0x220] sm:$0xff]
    %v534 = vld [vmem:[#allocation9 + $0x228] sm:$0xff]
    %v535 = vld [vmem:[#allocation9 + $0x230] sm:$0xff]
    %v536 = vld [vmem:[#allocation9 + $0x238] sm:$0xff]
    %v537 = vld [vmem:[#allocation9 + $0x240] sm:$0xff]
    %v538 = vld [vmem:[#allocation9 + $0x248] sm:$0xff]
    %v539 = vld [vmem:[#allocation9 + $0x250] sm:$0xff]
    %v540 = vld [vmem:[#allocation9 + $0x258] sm:$0xff]
    %v541 = vld [vmem:[#allocation9 + $0x260] sm:$0xff]
    %v542 = vld [vmem:[#allocation9 + $0x268] sm:$0xff]
    %v543 = vld [vmem:[#allocation9 + $0x270] sm:$0xff]
    %v544 = vld [vmem:[#allocation9 + $0x278] sm:$0xff]
    %v545 = vld [vmem:[#allocation9 + $0x280] sm:$0xff]
    %v546 = vld [vmem:[#allocation9 + $0x288] sm:$0xff]
    %v547 = vld [vmem:[#allocation9 + $0x290] sm:$0xff]
    %v548 = vld [vmem:[#allocation9 + $0x298] sm:$0xff]
    %v549 = vld [vmem:[#allocation9 + $0x2a0] sm:$0xff]
    %v550 = vld [vmem:[#allocation9 + $0x2a8] sm:$0xff]
    %v551 = vld [vmem:[#allocation9 + $0x2b0] sm:$0xff]
    %v552 = vld [vmem:[#allocation9 + $0x2b8] sm:$0xff]
    %v553 = vld [vmem:[#allocation9 + $0x2c0] sm:$0xff]
    %v554 = vld [vmem:[#allocation9 + $0x2c8] sm:$0xff]
    %v555 = vld [vmem:[#allocation9 + $0x2d0] sm:$0xff]
    %v556 = vld [vmem:[#allocation9 + $0x2d8] sm:$0xff]
    %v557 = vld [vmem:[#allocation9 + $0x2e0] sm:$0xff]
    %v558 = vld [vmem:[#allocation9 + $0x2e8] sm:$0xff]
    %v559 = vld [vmem:[#allocation9 + $0x2f0] sm:$0xff]
    %v560 = vld [vmem:[#allocation9 + $0x2f8] sm:$0xff]
    %v561 = vld [vmem:[#allocation9 + $0x300] sm:$0xff]
    %v562 = vld [vmem:[#allocation9 + $0x308] sm:$0xff]
    %v563 = vld [vmem:[#allocation9 + $0x310] sm:$0xff]
    %v564 = vld [vmem:[#allocation9 + $0x318] sm:$0xff]
    %v565 = vld [vmem:[#allocation9 + $0x320] sm:$0xff]
    %v566 = vld [vmem:[#allocation9 + $0x328] sm:$0xff]
    %v567 = vld [vmem:[#allocation9 + $0x330] sm:$0xff]
    %v568 = vld [vmem:[#allocation9 + $0x338] sm:$0xff]
    %v569 = vld [vmem:[#allocation9 + $0x340] sm:$0xff]
    %v570 = vld [vmem:[#allocation9 + $0x348] sm:$0xff]
    %v571 = vld [vmem:[#allocation9 + $0x350] sm:$0xff]
    %v572 = vld [vmem:[#allocation9 + $0x358] sm:$0xff]
    %v573 = vld [vmem:[#allocation9 + $0x360] sm:$0xff]
    %v574 = vld [vmem:[#allocation9 + $0x368] sm:$0xff]
    %v575 = vld [vmem:[#allocation9 + $0x370] sm:$0xff]
    %v576 = vld [vmem:[#allocation9 + $0x378] sm:$0xff]
    %v577 = vld [vmem:[#allocation9 + $0x380] sm:$0xff]
    %v578 = vld [vmem:[#allocation9 + $0x388] sm:$0xff]
    %v579 = vld [vmem:[#allocation9 + $0x390] sm:$0xff]
    %v580 = vld [vmem:[#allocation9 + $0x398] sm:$0xff]
    %v581 = vld [vmem:[#allocation9 + $0x3a0] sm:$0xff]
    %v582 = vld [vmem:[#allocation9 + $0x3a8] sm:$0xff]
    %v583 = vld [vmem:[#allocation9 + $0x3b0] sm:$0xff]
    %v584 = vld [vmem:[#allocation9 + $0x3b8] sm:$0xff]
    %v585 = vld [vmem:[#allocation9 + $0x3c0] sm:$0xff]
    %v586 = vld [vmem:[#allocation9 + $0x3c8] sm:$0xff]
    %v587 = vld [vmem:[#allocation9 + $0x3d0] sm:$0xff]
    %v588 = vld [vmem:[#allocation9 + $0x3d8] sm:$0xff]
    %v589 = vld [vmem:[#allocation9 + $0x3e0] sm:$0xff]
    %v590 = vld [vmem:[#allocation9 + $0x3e8] sm:$0xff]
    %v591 = vld [vmem:[#allocation9 + $0x3f0] sm:$0xff]
    %v592 = vld [vmem:[#allocation9 + $0x3f8] sm:$0xff]
    %v593 = vld [vmem:[#allocation10] sm:$0x3]
    %v595 = vperm.slane %v593, 0
    %v596 = vperm.slane %v593, 1
    %599 = vmatpush.msra.mxu0 %v495
    %600 = vmatpush.msra.mxu0 %v493
    %601 = vmatpush.msra.mxu0 %v491
    %602 = vmatpush.msra.mxu0 %v489
    %603 = vmatpush.msra.mxu0 %v487
    %604 = vmatpush.msra.mxu0 %v485
    %605 = vmatpush.msra.mxu0 %v483
    %606 = vmatpush.msra.mxu0 %v481
    %607 = vmatpush.msra.mxu0 %v479
    %608 = vmatpush.msra.mxu0 %v477
    %609 = vmatpush.msra.mxu0 %v475
    %610 = vmatpush.msra.mxu0 %v473
    %611 = vmatpush.msra.mxu0 %v471
    %612 = vmatpush.msra.mxu0 %v469
    %613 = vmatpush.msra.mxu0 %v467
    %614 = vmatpush.msra.mxu0 %v465
    %615 = vmatmul.f32.gmra.mxu0 %v461
    %v616 = vpop.f32.mrf.mxu0
    %v617 = vadd.f32 %v595, %v616
    %618 = vdwg.mxu0
    %619 = vmatpush.msra.mxu0 %v527
    %620 = vmatpush.msra.mxu0 %v525
    %621 = vmatpush.msra.mxu0 %v523
    %622 = vmatpush.msra.mxu0 %v521
    %623 = vmatpush.msra.mxu0 %v519
    %624 = vmatpush.msra.mxu0 %v517
    %625 = vmatpush.msra.mxu0 %v515
    %626 = vmatpush.msra.mxu0 %v513
    %627 = vmatpush.msra.mxu0 %v511
    %628 = vmatpush.msra.mxu0 %v509
    %629 = vmatpush.msra.mxu0 %v507
    %630 = vmatpush.msra.mxu0 %v505
    %631 = vmatpush.msra.mxu0 %v503
    %632 = vmatpush.msra.mxu0 %v501
    %633 = vmatpush.msra.mxu0 %v499
    %634 = vmatpush.msra.mxu0 %v497
    %635 = vmatmul.f32.gmra.mxu0 %v462
    %v636 = vpop.f32.mrf.mxu0
    %v637 = vadd.f32 %v617, %v636
    %638 = vdwg.mxu0
    %639 = vmatpush.msra.mxu0 %v559
    %640 = vmatpush.msra.mxu0 %v557
    %641 = vmatpush.msra.mxu0 %v555
    %642 = vmatpush.msra.mxu0 %v553
    %643 = vmatpush.msra.mxu0 %v551
    %644 = vmatpush.msra.mxu0 %v549
    %645 = vmatpush.msra.mxu0 %v547
    %646 = vmatpush.msra.mxu0 %v545
    %647 = vmatpush.msra.mxu0 %v543
    %648 = vmatpush.msra.mxu0 %v541
    %649 = vmatpush.msra.mxu0 %v539
    %650 = vmatpush.msra.mxu0 %v537
    %651 = vmatpush.msra.mxu0 %v535
    %652 = vmatpush.msra.mxu0 %v533
    %653 = vmatpush.msra.mxu0 %v531
    %654 = vmatpush.msra.mxu0 %v529
    %655 = vmatmul.f32.gmra.mxu0 %v463
    %v656 = vpop.f32.mrf.mxu0
    %v657 = vadd.f32 %v637, %v656
    %658 = vdwg.mxu0
    %659 = vmatpush.msra.mxu0 %v591
    %660 = vmatpush.msra.mxu0 %v589
    %661 = vmatpush.msra.mxu0 %v587
    %662 = vmatpush.msra.mxu0 %v585
    %663 = vmatpush.msra.mxu0 %v583
    %664 = vmatpush.msra.mxu0 %v581
    %665 = vmatpush.msra.mxu0 %v579
    %666 = vmatpush.msra.mxu0 %v577
    %667 = vmatpush.msra.mxu0 %v575
    %668 = vmatpush.msra.mxu0 %v573
    %669 = vmatpush.msra.mxu0 %v571
    %670 = vmatpush.msra.mxu0 %v569
    %671 = vmatpush.msra.mxu0 %v567
    %672 = vmatpush.msra.mxu0 %v565
    %673 = vmatpush.msra.mxu0 %v563
    %674 = vmatpush.msra.mxu0 %v561
    %675 = vmatmul.f32.gmra.mxu0 %v464
    %v676 = vpop.f32.mrf.mxu0
    %v677 = vadd.f32 %v657, %v676
    %678 = vdwg.mxu0
    %679 = vmatpush.msra.mxu0 %v496
    %680 = vmatpush.msra.mxu0 %v494
    %681 = vmatpush.msra.mxu0 %v492
    %682 = vmatpush.msra.mxu0 %v490
    %683 = vmatpush.msra.mxu0 %v488
    %684 = vmatpush.msra.mxu0 %v486
    %685 = vmatpush.msra.mxu0 %v484
    %686 = vmatpush.msra.mxu0 %v482
    %687 = vmatpush.msra.mxu0 %v480
    %688 = vmatpush.msra.mxu0 %v478
    %689 = vmatpush.msra.mxu0 %v476
    %690 = vmatpush.msra.mxu0 %v474
    %691 = vmatpush.msra.mxu0 %v472
    %692 = vmatpush.msra.mxu0 %v470
    %693 = vmatpush.msra.mxu0 %v468
    %694 = vmatpush.msra.mxu0 %v466
    %695 = vmatmul.f32.gmra.mxu0 %v461
    %v696 = vpop.f32.mrf.mxu0
    %v697 = vadd.f32 %v596, %v696
    %698 = vdwg.mxu0
    %699 = vmatpush.msra.mxu0 %v528
    %700 = vmatpush.msra.mxu0 %v526
    %701 = vmatpush.msra.mxu0 %v524
    %702 = vmatpush.msra.mxu0 %v522
    %703 = vmatpush.msra.mxu0 %v520
    %704 = vmatpush.msra.mxu0 %v518
    %705 = vmatpush.msra.mxu0 %v516
    %706 = vmatpush.msra.mxu0 %v514
    %707 = vmatpush.msra.mxu0 %v512
    %708 = vmatpush.msra.mxu0 %v510
    %709 = vmatpush.msra.mxu0 %v508
    %710 = vmatpush.msra.mxu0 %v506
    %711 = vmatpush.msra.mxu0 %v504
    %712 = vmatpush.msra.mxu0 %v502
    %713 = vmatpush.msra.mxu0 %v500
    %714 = vmatpush.msra.mxu0 %v498
    %715 = vmatmul.f32.gmra.mxu0 %v462
    %v716 = vpop.f32.mrf.mxu0
    %v717 = vadd.f32 %v697, %v716
    %718 = vdwg.mxu0
    %719 = vmatpush.msra.mxu0 %v560
    %720 = vmatpush.msra.mxu0 %v558
    %721 = vmatpush.msra.mxu0 %v556
    %722 = vmatpush.msra.mxu0 %v554
    %723 = vmatpush.msra.mxu0 %v552
    %724 = vmatpush.msra.mxu0 %v550
    %725 = vmatpush.msra.mxu0 %v548
    %726 = vmatpush.msra.mxu0 %v546
    %727 = vmatpush.msra.mxu0 %v544
    %728 = vmatpush.msra.mxu0 %v542
    %729 = vmatpush.msra.mxu0 %v540
    %730 = vmatpush.msra.mxu0 %v538
    %731 = vmatpush.msra.mxu0 %v536
    %732 = vmatpush.msra.mxu0 %v534
    %733 = vmatpush.msra.mxu0 %v532
    %734 = vmatpush.msra.mxu0 %v530
    %735 = vmatmul.f32.gmra.mxu0 %v463
    %v736 = vpop.f32.mrf.mxu0
    %v737 = vadd.f32 %v717, %v736
    %738 = vdwg.mxu0
    %739 = vmatpush.msra.mxu0 %v592
    %740 = vmatpush.msra.mxu0 %v590
    %741 = vmatpush.msra.mxu0 %v588
    %742 = vmatpush.msra.mxu0 %v586
    %743 = vmatpush.msra.mxu0 %v584
    %744 = vmatpush.msra.mxu0 %v582
    %745 = vmatpush.msra.mxu0 %v580
    %746 = vmatpush.msra.mxu0 %v578
    %747 = vmatpush.msra.mxu0 %v576
    %748 = vmatpush.msra.mxu0 %v574
    %749 = vmatpush.msra.mxu0 %v572
    %750 = vmatpush.msra.mxu0 %v570
    %751 = vmatpush.msra.mxu0 %v568
    %752 = vmatpush.msra.mxu0 %v566
    %753 = vmatpush.msra.mxu0 %v564
    %754 = vmatpush.msra.mxu0 %v562
    %755 = vmatmul.f32.gmra.mxu0 %v464
    %v756 = vpop.f32.mrf.mxu0
    %v757 = vadd.f32 %v737, %v756
    %758 = vdwg.mxu0
    %v759 = vld [vmem:[#allocation12] sm:$0x3]
    %v760 = vld [vmem:[#allocation13] sm:$0x3]
    %v761 = vmul.f32 %v677, %v150
    %v762 = vmul.f32 %v757, %v150
    %v763 = vrot.slane %v761, 4
    %v764 = vadd.f32 %v761, %v763
    %v765 = vrot.slane %v764, 2
    %v766 = vadd.f32 %v764, %v765
    %v767 = vrot.slane %v766, 1
    %v768 = vadd.f32 %v766, %v767
    %v769 = vrot.slane %v762, 4
    %v770 = vadd.f32 %v762, %v769
    %v771 = vrot.slane %v770, 2
    %v772 = vadd.f32 %v770, %v771
    %v773 = vrot.slane %v772, 1
    %v774 = vadd.f32 %v772, %v773
    %v775 = vmul.f32 %v768, 0.25
    %v776 = vmul.f32 %v774, 0.25
    %v777 = vsub.f32 %v677, %v775
    %v778 = vsub.f32 %v757, %v776
    %v779 = vmul.f32 %v777, %v150
    %v780 = vmul.f32 %v778, %v150
    %v781 = vmul.f32 %v779, %v779
    %v782 = vmul.f32 %v780, %v780
    %v783 = vrot.slane %v781, 4
    %v784 = vadd.f32 %v781, %v783
    %v785 = vrot.slane %v784, 2
    %v786 = vadd.f32 %v784, %v785
    %v787 = vrot.slane %v786, 1
    %v788 = vadd.f32 %v786, %v787
    %v789 = vrot.slane %v782, 4
    %v790 = vadd.f32 %v782, %v789
    %v791 = vrot.slane %v790, 2
    %v792 = vadd.f32 %v790, %v791
    %v793 = vrot.slane %v792, 1
    %v794 = vadd.f32 %v792, %v793
    %v795 = vmul.f32 %v788, 0.25
    %v796 = vmul.f32 %v794, 0.25
    %v797 = vadd.f32 %v795, 1e-05
    %v798 = vadd.f32 %v796, 1e-05
    %v799 = vrsqrt.pop %v797
    %v800 = vmul.f32 %v799, %v797
    %v801 = vmul.f32 %v800, %v799
    %v802 = vmul.f32 0.5, %v801
    %v803 = vsub.f32 1.5, %v802
    %v804 = vmul.f32 %v799, %v803
    %vm805 = vweird.f32 %v797
    %vm806 = vweird.f32 %v799
    %vm807 = vmor %vm805, %vm806
    %v808 = vsel %vm807, %v799, %v804
    %v809 = vrsqrt.pop %v798
    %v810 = vmul.f32 %v809, %v798
    %v811 = vmul.f32 %v810, %v809
    %v812 = vmul.f32 0.5, %v811
    %v813 = vsub.f32 1.5, %v812
    %v814 = vmul.f32 %v809, %v813
    %vm815 = vweird.f32 %v798
    %vm816 = vweird.f32 %v809
    %vm817 = vmor %vm815, %vm816
    %v818 = vsel %vm817, %v809, %v814
    %v819 = vmul.f32 %v777, %v808
    %v820 = vmul.f32 %v778, %v818
    %v822 = vperm.slane %v759, 0
    %v823 = vperm.slane %v759, 1
    %v826 = vmul.f32 %v819, %v822
    %v827 = vmul.f32 %v820, %v823
    %v829 = vperm.slane %v760, 0
    %v830 = vperm.slane %v760, 1
    %v833 = vadd.f32 %v826, %v829
    %v834 = vadd.f32 %v827, %v830
    %vm835 = vcmp.ge.f32.partialorder %v833, 0.0
    %vm836 = vcmp.ge.f32.partialorder %v834, 0.0
    %v837 = vmul.f32 %v833, 0.2
    %v838 = vmul.f32 %v834, 0.2
    %v839 = vsel %vm835, %v833, %v837
    %v840 = vsel %vm836, %v834, %v838
    %v841 = vpack.c.bf16 %v840, %v839
    %842 = vst [vmem:[%s9] sm:$0xff] %v841
    // Predicated region
    $region70: #{generator_forward.2} parent=1 // pred_check
      _
    $region71: #{generator_forward.2} parent=1 // pred_check_branch
      %844 = sbr.rel (0) target = $region73
    $region72: #{generator_forward.2} parent=1 // pred_region
      _
    $region73: #{generator_forward.2} parent=1 // pred_fallthru
      _
    // Predicated region
    $region74: #{generator_forward.2} parent=1 // pred_check
      _
    $region75: #{generator_forward.2} parent=1 // pred_check_branch
      %846 = sbr.rel (0) target = $region77
    $region76: #{generator_forward.2} parent=1 // pred_region
      _
    $region77: #{generator_forward.2} parent=1 // pred_fallthru
      _
    %847 = vsyncpa [#allocation3], 1
    %848 = vsyncpa [#allocation5], 1
    %849 = vsyncpa [#allocation8], 1
    %850 = vsyncpa [#allocation11], 1
    %851 = vsyncpa [#allocation14], 1

// kernel: generator_forward.3
$region0: #{generator_forward.3}
  #allocation0 [shape = 'u32[]', space=smem, size = 0x4, offset = 0x4, fixed_abs, tag = 'smem constant byte address 0x4 - core index']
  #allocation1 [shape = 'u32[72,128]{1,0:T(1,128)}', space=vmem, size = 0x9000, scoped, tag = 'internal scratch']
  %s0 = inlined_call_operand.vmem [shape: bf16[8,256], index: 0, kind: input, shape index: {}]
  %s1 = inlined_call_operand.hbm [shape: bf16[256,4096], index: 1, kind: input, shape index: {}]
  %s2 = inlined_call_operand.hbm [shape: f32[1,4096], index: 2, kind: input, shape index: {}]
  %s3 = inlined_call_operand.vmem [shape: f32[8,4096], index: 3, kind: output, shape index: {}]
  %s4 = sld [smem:[#allocation0]]
  $region53: #{generator_forward.3} parent=0
    _
  %s6 = ssub.s32 1, %s4
  %s7 = scalar_select 0, %s6, %s4
  $region1: #{generator_forward.3} parent=0
    #allocation2 [shape = 'u8[1048576]{0}', space=vmem, size = 0x100000, scoped, tag = 'input window, operand 1']
    #allocation3 [shape = 's32[2]{0}', space=sflag, size = 0x8, scoped, tag = 'scoped memory for generator_forward.3']
    #allocation4 [shape = 'u8[8192]{0}', space=vmem, size = 0x2000, scoped, tag = 'input window, operand 2']
    #allocation5 [shape = 's32[2]{0}', space=sflag, size = 0x8, scoped, tag = 'scoped memory for generator_forward.3']
    %8 = vsyncpa [#allocation3], 0
    %s9 = scalar_lea.sflag [#allocation3], 1
    %10 = vsyncpa %s9, 0
    %11 = vsyncpa [#allocation5], 0
    %s12 = scalar_lea.sflag [#allocation5], 1
    %13 = vsyncpa %s12, 0
    loop: start=0, step=1, limit=6
    $region2: #{generator_forward.3} parent=1 // loop_pre_header
      _
    $region3: #{generator_forward.3} parent=1 // loop_header
      %s15 = sphi 0, %s19
      %p16 = scmp.ge.s32.totalorder %s15, 6
      %s23 = sphi 0, %s23
      %s25 = sphi 0, %s23
      %s26 = sphi 0, %s25
      %s40 = sphi 0, %s26
      %s46 = sphi 0, %s48
      %s49 = sphi 0, %s46
      %s50 = sphi 0, %s49
      %s66 = sphi 0, %s50
      %s72 = sphi 0, %s74
      %s75 = sphi 0, %s72
      %s76 = sphi 0, %s75
      %s92 = sphi 0, %s76
      %s98 = sphi 0, %s100
      %s101 = sphi 0, %s98
      %s102 = sphi 0, %s101
      %s118 = sphi 0, %s102
    $region4: #{generator_forward.3} parent=1 // loop_header_branch
      %18 = sbr.rel (%p16) target = $region8
    $region5: #{generator_forward.3} parent=1 // loop_body
      %s20 = ssub.s32 %s15, 1
      %s21 = ssub.s32 %s15, 2
      %s22 = sadd.s32 %s15, 1
      %s24 = sadd.s32 %s23, 1
      %p27 = scmp.eq.s32.totalorder %s15, 3
      %p28 = scmp.ne.s32.totalorder %s23, %s25
      %p29 = scmp.eq.s32.totalorder %s15, 0
      %p30 = por %p28, %p29
      %p31 = scmp.ne.s32.totalorder %s23, %s25
      %p32 = scmp.eq.s32.totalorder %s20, 3
      %p33 = por %p31, %p32
      %p34 = scmp.ne.s32.totalorder %s25, %s26
      %p35 = scmp.eq.s32.totalorder %s20, 0
      %p36 = por %p34, %p35
      %p37 = scmp.ne.s32.totalorder %s25, %s26
      %p38 = scmp.eq.s32.totalorder %s21, 3
      %p39 = por %p37, %p38
      %p41 = scmp.ne.s32.totalorder %s26, %s40
      %p42 = scmp.eq.s32.totalorder %s21, 0
      %p43 = por %p41, %p42
      %s44 = ssub.s32 %s15, %s22
      %p45 = scmp.eq.s32.totalorder %s44, 0
      %s47 = sadd.s32 %s46, 1
      %s48 = scalar_select %p45, %s46, %s47
      %p51 = pneg %p45
      %p52 = scmp.eq.s32.totalorder %s15, 3
      %p53 = por %p51, %p52
      %p54 = scmp.ne.s32.totalorder %s46, %s49
      %p55 = scmp.eq.s32.totalorder %s15, 0
      %p56 = por %p54, %p55
      %p57 = scmp.ne.s32.totalorder %s46, %s49
      %p58 = scmp.eq.s32.totalorder %s20, 3
      %p59 = por %p57, %p58
      %p60 = scmp.ne.s32.totalorder %s49, %s50
      %p61 = scmp.eq.s32.totalorder %s20, 0
      %p62 = por %p60, %p61
      %p63 = scmp.ne.s32.totalorder %s49, %s50
      %p64 = scmp.eq.s32.totalorder %s21, 3
      %p65 = por %p63, %p64
      %p67 = scmp.ne.s32.totalorder %s50, %s66
      %p68 = scmp.eq.s32.totalorder %s21, 0
      %p69 = por %p67, %p68
      %s70 = ssub.s32 %s15, %s22
      %p71 = scmp.eq.s32.totalorder %s70, 0
      %s73 = sadd.s32 %s72, 1
      %s74 = scalar_select %p71, %s72, %s73
      %p77 = pneg %p71
      %p78 = scmp.eq.s32.totalorder %s15, 3
      %p79 = por %p77, %p78
      %p80 = scmp.ne.s32.totalorder %s72, %s75
      %p81 = scmp.eq.s32.totalorder %s15, 0
      %p82 = por %p80, %p81
      %p83 = scmp.ne.s32.totalorder %s72, %s75
      %p84 = scmp.eq.s32.totalorder %s20, 3
      %p85 = por %p83, %p84
      %p86 = scmp.ne.s32.totalorder %s75, %s76
      %p87 = scmp.eq.s32.totalorder %s20, 0
      %p88 = por %p86, %p87
      %p89 = scmp.ne.s32.totalorder %s75, %s76
      %p90 = scmp.eq.s32.totalorder %s21, 3
      %p91 = por %p89, %p90
      %p93 = scmp.ne.s32.totalorder %s76, %s92
      %p94 = scmp.eq.s32.totalorder %s21, 0
      %p95 = por %p93, %p94
      %s96 = ssub.s32 %s15, %s22
      %p97 = scmp.eq.s32.totalorder %s96, 0
      %s99 = sadd.s32 %s98, 1
      %s100 = scalar_select %p97, %s98, %s99
      %p103 = pneg %p97
      %p104 = scmp.eq.s32.totalorder %s15, 3
      %p105 = por %p103, %p104
      %p106 = scmp.ne.s32.totalorder %s98, %s101
      %p107 = scmp.eq.s32.totalorder %s15, 0
      %p108 = por %p106, %p107
      %p109 = scmp.ne.s32.totalorder %s98, %s101
      %p110 = scmp.eq.s32.totalorder %s20, 3
      %p111 = por %p109, %p110
      %p112 = scmp.ne.s32.totalorder %s101, %s102
      %p113 = scmp.eq.s32.totalorder %s20, 0
      %p114 = por %p112, %p113
      %p115 = scmp.ne.s32.totalorder %s101, %s102
      %p116 = scmp.eq.s32.totalorder %s21, 3
      %p117 = por %p115, %p116
      %p119 = scmp.ne.s32.totalorder %s102, %s118
      %p120 = scmp.eq.s32.totalorder %s21, 0
      %p121 = por %p119, %p120
      %p122 = scmp.le.s32.totalorder 1, %s15
      %p123 = scmp.lt.s32.totalorder %s15, 5
      %p124 = pnand %p122, %p123
      %p125 = pneg %p124
      // Predicated region
      $region9: #{generator_forward.3} parent=5 // pred_check
        _
      $region10: #{generator_forward.3} parent=5 // pred_check_branch
        %127 = sbr.rel (%p124) target = $region12
      $region11: #{generator_forward.3} parent=5 // pred_region
        %s128 = ssub.s32 %s15, 1
        // Predicated region
        $region13: #{generator_forward.3} parent=11 // pred_check
          %p129 = pneg %p36
        $region14: #{generator_forward.3} parent=11 // pred_check_branch
          %131 = sbr.rel (%p129) target = $region16
        $region15: #{generator_forward.3} parent=11 // pred_region
          _
        $region16: #{generator_forward.3} parent=11 // pred_fallthru
          _
      $region12: #{generator_forward.3} parent=5 // pred_fallthru
        _
      %p132 = scmp.lt.s32.totalorder %s15, 4
      // Predicated region
      $region17: #{generator_forward.3} parent=5 // pred_check
        %p133 = pneg %p132
      $region18: #{generator_forward.3} parent=5 // pred_check_branch
        %135 = sbr.rel (%p133) target = $region20
      $region19: #{generator_forward.3} parent=5 // pred_region
        // Predicated region
        $region21: #{generator_forward.3} parent=19 // pred_check
          %p136 = pneg %p56
        $region22: #{generator_forward.3} parent=19 // pred_check_branch
          %138 = sbr.rel (%p136) target = $region24
        $region23: #{generator_forward.3} parent=19 // pred_region
          %s139 = sand.u32 %s46, 1
          %s140 = scalar_lea.sflag [#allocation3], %s139
          %s141 = sand.u32 %s46, 1
          %s142 = smul.addr %s141, 1024
          %s143 = scalar_lea.vmem [#allocation2], %s142
          %s144 = smul.u32 8, %s15
          %146 = vsyncadd %s140, 0
          %s147 = smul.addr %s144, 4
          %s148 = scalar_lea.hbm %s1, %s147
          %s149 = sshll.u32 %s148, 4
          %s150 = int_to_ptr.hbm [resolvable:$true] %s149
          %s151 = sshll.u32 %s143, 4
          %s152 = int_to_ptr.vmem [resolvable:$true] %s151
          %157 = dma.hbm_to_vmem [thread:$0]  %s150, 16384, %s152, %s140, 2048, 512, 32
        $region24: #{generator_forward.3} parent=19 // pred_fallthru
          _
        // Predicated region
        $region25: #{generator_forward.3} parent=19 // pred_check
          %p158 = pneg %p82
        $region26: #{generator_forward.3} parent=19 // pred_check_branch
          %160 = sbr.rel (%p158) target = $region28
        $region27: #{generator_forward.3} parent=19 // pred_region
          %s161 = sand.u32 %s72, 1
          %s162 = scalar_lea.sflag [#allocation5], %s161
          %s163 = sand.u32 %s72, 1
          %s164 = smul.addr %s163, 8
          %s165 = scalar_lea.vmem [#allocation4], %s164
          %s166 = smul.u32 8, %s15
          %168 = vsyncadd %s162, 0
          %s169 = scalar_lea.hbm %s2, %s166
          %s171 = sshll.u32 %s169, 4
          %s172 = int_to_ptr.hbm [resolvable:$true] %s171
          %s173 = sshll.u32 %s165, 4
          %s174 = int_to_ptr.vmem [resolvable:$true] %s173
          %176 = dma.hbm_to_vmem [thread:$0]  %s172, 128, %s174, %s162
        $region28: #{generator_forward.3} parent=19 // pred_fallthru
          _
      $region20: #{generator_forward.3} parent=5 // pred_fallthru
        _
      %p177 = scmp.le.s32.totalorder 1, %s15
      %p178 = scmp.lt.s32.totalorder %s15, 5
      %p179 = pnand %p177, %p178
      %p180 = pneg %p179
      // Predicated region
      $region29: #{generator_forward.3} parent=5 // pred_check
        _
      $region30: #{generator_forward.3} parent=5 // pred_check_branch
        %182 = sbr.rel (%p179) target = $region32
      $region31: #{generator_forward.3} parent=5 // pred_region
        %s183 = ssub.s32 %s15, 1
        %s184 = sand.u32 %s49, 1
        %s185 = scalar_lea.sflag [#allocation3], %s184
        %s186 = sand.u32 %s49, 1
        %s187 = smul.addr %s186, 1024
        %s188 = scalar_lea.vmem [#allocation2], %s187
        // Predicated region
        $region33: #{generator_forward.3} parent=31 // pred_check
          %p189 = pneg %p62
        $region34: #{generator_forward.3} parent=31 // pred_check_branch
          %191 = sbr.rel (%p189) target = $region36
        $region35: #{generator_forward.3} parent=31 // pred_region
          %193 = dma.done %s185, 16384
        $region36: #{generator_forward.3} parent=31 // pred_fallthru
          _
        %s194 = sand.u32 %s75, 1
        %s195 = scalar_lea.sflag [#allocation5], %s194
        %s196 = sand.u32 %s75, 1
        %s197 = smul.addr %s196, 8
        %s198 = scalar_lea.vmem [#allocation4], %s197
        // Predicated region
        $region37: #{generator_forward.3} parent=31 // pred_check
          %p199 = pneg %p88
        $region38: #{generator_forward.3} parent=31 // pred_check_branch
          %201 = sbr.rel (%p199) target = $region40
        $region39: #{generator_forward.3} parent=31 // pred_region
          %203 = dma.done %s195, 128
        $region40: #{generator_forward.3} parent=31 // pred_fallthru
          _
        %p204 = pneg %p36
        %p205 = pneg %p33
        %s206 = sand.u32 %s49, 1
        %s207 = scalar_lea.sflag [#allocation3], %s206
        %s208 = sand.u32 %s49, 1
        %s209 = smul.addr %s208, 1024
        %s210 = scalar_lea.vmem [#allocation2], %s209
        %p211 = pneg %p62
        %p212 = pneg %p59
        %s213 = sand.u32 %s75, 1
        %s214 = scalar_lea.sflag [#allocation5], %s213
        %s215 = sand.u32 %s75, 1
        %s216 = smul.addr %s215, 8
        %s217 = scalar_lea.vmem [#allocation4], %s216
        %p218 = pneg %p88
        %p219 = pneg %p85
        %p220 = pneg %p114
        %p221 = pneg %p111
        %s222 = smul.u32 8, %s20
        %p223 = scmp.lt.s32.totalorder %s222, 31
        %s224 = scalar_select %p223, %s222, 31
        %s225 = smul.addr %s224, 8
        %s226 = scalar_lea.vmem %s3, %s225
        %s227 = smul.u32 8, %s20
        %s228 = smul.u32 8, %s20
        %s229 = smul.u32 8, %s20
        %p230 = scmp.lt.s32.totalorder %s229, 31
        %s231 = scalar_select %p230, %s229, 31
        %s232 = smul.addr %s231, 8
        %s233 = scalar_lea.vmem %s3, %s232
        %s234 = smul.u32 8, %s20
        %v235 = vld [vmem:[%s0] sm:$0xff]
        %v236 = vld [vmem:[%s188] sm:$0xff]
        %v237 = vld [vmem:[%s188 + $0x8] sm:$0xff]
        %v238 = vld [vmem:[%s188 + $0x10] sm:$0xff]
        %v239 = vld [vmem:[%s188 + $0x18] sm:$0xff]
        %v240 = vld [vmem:[%s188 + $0x20] sm:$0xff]
        %v241 = vld [vmem:[%s188 + $0x28] sm:$0xff]
        %v242 = vld [vmem:[%s188 + $0x30] sm:$0xff]
        %v243 = vld [vmem:[%s188 + $0x38] sm:$0xff]
        %v244 = vld [vmem:[%s188 + $0x40] sm:$0xff]
        %v245 = vld [vmem:[%s188 + $0x48] sm:$0xff]
        %v246 = vld [vmem:[%s188 + $0x50] sm:$0xff]
        %v247 = vld [vmem:[%s188 + $0x58] sm:$0xff]
        %v248 = vld [vmem:[%s188 + $0x60] sm:$0xff]
        %v249 = vld [vmem:[%s188 + $0x68] sm:$0xff]
        %v250 = vld [vmem:[%s188 + $0x70] sm:$0xff]
        %v251 = vld [vmem:[%s188 + $0x78] sm:$0xff]
        %v252 = vld [vmem:[%s188 + $0x80] sm:$0xff]
        %v253 = vld [vmem:[%s188 + $0x88] sm:$0xff]
        %v254 = vld [vmem:[%s188 + $0x90] sm:$0xff]
        %v255 = vld [vmem:[%s188 + $0x98] sm:$0xff]
        %v256 = vld [vmem:[%s188 + $0xa0] sm:$0xff]
        %v257 = vld [vmem:[%s188 + $0xa8] sm:$0xff]
        %v258 = vld [vmem:[%s188 + $0xb0] sm:$0xff]
        %v259 = vld [vmem:[%s188 + $0xb8] sm:$0xff]
        %v260 = vld [vmem:[%s188 + $0xc0] sm:$0xff]
        %v261 = vld [vmem:[%s188 + $0xc8] sm:$0xff]
        %v262 = vld [vmem:[%s188 + $0xd0] sm:$0xff]
        %v263 = vld [vmem:[%s188 + $0xd8] sm:$0xff]
        %v264 = vld [vmem:[%s188 + $0xe0] sm:$0xff]
        %v265 = vld [vmem:[%s188 + $0xe8] sm:$0xff]
        %v266 = vld [vmem:[%s188 + $0xf0] sm:$0xff]
        %v267 = vld [vmem:[%s188 + $0xf8] sm:$0xff]
        %v268 = vld [vmem:[%s188 + $0x100] sm:$0xff]
        %v269 = vld [vmem:[%s188 + $0x108] sm:$0xff]
        %v270 = vld [vmem:[%s188 + $0x110] sm:$0xff]
        %v271 = vld [vmem:[%s188 + $0x118] sm:$0xff]
        %v272 = vld [vmem:[%s188 + $0x120] sm:$0xff]
        %v273 = vld [vmem:[%s188 + $0x128] sm:$0xff]
        %v274 = vld [vmem:[%s188 + $0x130] sm:$0xff]
        %v275 = vld [vmem:[%s188 + $0x138] sm:$0xff]
        %v276 = vld [vmem:[%s188 + $0x140] sm:$0xff]
        %v277 = vld [vmem:[%s188 + $0x148] sm:$0xff]
        %v278 = vld [vmem:[%s188 + $0x150] sm:$0xff]
        %v279 = vld [vmem:[%s188 + $0x158] sm:$0xff]
        %v280 = vld [vmem:[%s188 + $0x160] sm:$0xff]
        %v281 = vld [vmem:[%s188 + $0x168] sm:$0xff]
        %v282 = vld [vmem:[%s188 + $0x170] sm:$0xff]
        %v283 = vld [vmem:[%s188 + $0x178] sm:$0xff]
        %v284 = vld [vmem:[%s188 + $0x180] sm:$0xff]
        %v285 = vld [vmem:[%s188 + $0x188] sm:$0xff]
        %v286 = vld [vmem:[%s188 + $0x190] sm:$0xff]
        %v287 = vld [vmem:[%s188 + $0x198] sm:$0xff]
        %v288 = vld [vmem:[%s188 + $0x1a0] sm:$0xff]
        %v289 = vld [vmem:[%s188 + $0x1a8] sm:$0xff]
        %v290 = vld [vmem:[%s188 + $0x1b0] sm:$0xff]
        %v291 = vld [vmem:[%s188 + $0x1b8] sm:$0xff]
        %v292 = vld [vmem:[%s188 + $0x1c0] sm:$0xff]
        %v293 = vld [vmem:[%s188 + $0x1c8] sm:$0xff]
        %v294 = vld [vmem:[%s188 + $0x1d0] sm:$0xff]
        %v295 = vld [vmem:[%s188 + $0x1d8] sm:$0xff]
        %v296 = vld [vmem:[%s188 + $0x1e0] sm:$0xff]
        %v297 = vld [vmem:[%s188 + $0x1e8] sm:$0xff]
        %v298 = vld [vmem:[%s188 + $0x1f0] sm:$0xff]
        %v299 = vld [vmem:[%s188 + $0x1f8] sm:$0xff]
        %v300 = vld [vmem:[%s188 + $0x200] sm:$0xff]
        %v301 = vld [vmem:[%s188 + $0x208] sm:$0xff]
        %v302 = vld [vmem:[%s188 + $0x210] sm:$0xff]
        %v303 = vld [vmem:[%s188 + $0x218] sm:$0xff]
        %v304 = vld [vmem:[%s188 + $0x220] sm:$0xff]
        %v305 = vld [vmem:[%s188 + $0x228] sm:$0xff]
        %v306 = vld [vmem:[%s188 + $0x230] sm:$0xff]
        %v307 = vld [vmem:[%s188 + $0x238] sm:$0xff]
        %v308 = vld [vmem:[%s188 + $0x240] sm:$0xff]
        %v309 = vld [vmem:[%s188 + $0x248] sm:$0xff]
        %v310 = vld [vmem:[%s188 + $0x250] sm:$0xff]
        %v311 = vld [vmem:[%s188 + $0x258] sm:$0xff]
        %v312 = vld [vmem:[%s188 + $0x260] sm:$0xff]
        %v313 = vld [vmem:[%s188 + $0x268] sm:$0xff]
        %v314 = vld [vmem:[%s188 + $0x270] sm:$0xff]
        %v315 = vld [vmem:[%s188 + $0x278] sm:$0xff]
        %v316 = vld [vmem:[%s188 + $0x280] sm:$0xff]
        %v317 = vld [vmem:[%s188 + $0x288] sm:$0xff]
        %v318 = vld [vmem:[%s188 + $0x290] sm:$0xff]
        %v319 = vld [vmem:[%s188 + $0x298] sm:$0xff]
        %v320 = vld [vmem:[%s188 + $0x2a0] sm:$0xff]
        %v321 = vld [vmem:[%s188 + $0x2a8] sm:$0xff]
        %v322 = vld [vmem:[%s188 + $0x2b0] sm:$0xff]
        %v323 = vld [vmem:[%s188 + $0x2b8] sm:$0xff]
        %v324 = vld [vmem:[%s188 + $0x2c0] sm:$0xff]
        %v325 = vld [vmem:[%s188 + $0x2c8] sm:$0xff]
        %v326 = vld [vmem:[%s188 + $0x2d0] sm:$0xff]
        %v327 = vld [vmem:[%s188 + $0x2d8] sm:$0xff]
        %v328 = vld [vmem:[%s188 + $0x2e0] sm:$0xff]
        %v329 = vld [vmem:[%s188 + $0x2e8] sm:$0xff]
        %v330 = vld [vmem:[%s188 + $0x2f0] sm:$0xff]
        %v331 = vld [vmem:[%s188 + $0x2f8] sm:$0xff]
        %v332 = vld [vmem:[%s188 + $0x300] sm:$0xff]
        %v333 = vld [vmem:[%s188 + $0x308] sm:$0xff]
        %v334 = vld [vmem:[%s188 + $0x310] sm:$0xff]
        %v335 = vld [vmem:[%s188 + $0x318] sm:$0xff]
        %v336 = vld [vmem:[%s188 + $0x320] sm:$0xff]
        %v337 = vld [vmem:[%s188 + $0x328] sm:$0xff]
        %v338 = vld [vmem:[%s188 + $0x330] sm:$0xff]
        %v339 = vld [vmem:[%s188 + $0x338] sm:$0xff]
        %v340 = vld [vmem:[%s188 + $0x340] sm:$0xff]
        %v341 = vld [vmem:[%s188 + $0x348] sm:$0xff]
        %v342 = vld [vmem:[%s188 + $0x350] sm:$0xff]
        %v343 = vld [vmem:[%s188 + $0x358] sm:$0xff]
        %v344 = vld [vmem:[%s188 + $0x360] sm:$0xff]
        %v345 = vld [vmem:[%s188 + $0x368] sm:$0xff]
        %v346 = vld [vmem:[%s188 + $0x370] sm:$0xff]
        %v347 = vld [vmem:[%s188 + $0x378] sm:$0xff]
        %v348 = vld [vmem:[%s188 + $0x380] sm:$0xff]
        %v349 = vld [vmem:[%s188 + $0x388] sm:$0xff]
        %v350 = vld [vmem:[%s188 + $0x390] sm:$0xff]
        %v351 = vld [vmem:[%s188 + $0x398] sm:$0xff]
        %v352 = vld [vmem:[%s188 + $0x3a0] sm:$0xff]
        %v353 = vld [vmem:[%s188 + $0x3a8] sm:$0xff]
        %v354 = vld [vmem:[%s188 + $0x3b0] sm:$0xff]
        %v355 = vld [vmem:[%s188 + $0x3b8] sm:$0xff]
        %v356 = vld [vmem:[%s188 + $0x3c0] sm:$0xff]
        %v357 = vld [vmem:[%s188 + $0x3c8] sm:$0xff]
        %v358 = vld [vmem:[%s188 + $0x3d0] sm:$0xff]
        %v359 = vld [vmem:[%s188 + $0x3d8] sm:$0xff]
        %v360 = vld [vmem:[%s188 + $0x3e0] sm:$0xff]
        %v361 = vld [vmem:[%s188 + $0x3e8] sm:$0xff]
        %v362 = vld [vmem:[%s188 + $0x3f0] sm:$0xff]
        %v363 = vld [vmem:[%s188 + $0x3f8] sm:$0xff]
        %v364 = vld [vmem:[%s198] sm:$0xff]
        %v366 = vperm.slane %v364, 0
        %v367 = vperm.slane %v364, 1
        %v368 = vperm.slane %v364, 2
        %v369 = vperm.slane %v364, 3
        %v370 = vperm.slane %v364, 4
        %v371 = vperm.slane %v364, 5
        %v372 = vperm.slane %v364, 6
        %v373 = vperm.slane %v364, 7
        %v383 = vunpack.c.l.b16 %v235
        %v384 = vunpack.c.h.b16 %v235
        %v385 = vpack.c.b16 %v383, %v383
        %v386 = vpack.c.b16 %v384, %v384
        %v517 = vunpack.c.l.b16 %v236
        %v518 = vunpack.c.h.b16 %v236
        %v519 = vunpack.c.l.b16 %v237
        %v520 = vunpack.c.h.b16 %v237
        %v521 = vunpack.c.l.b16 %v238
        %v522 = vunpack.c.h.b16 %v238
        %v523 = vunpack.c.l.b16 %v239
        %v524 = vunpack.c.h.b16 %v239
        %v525 = vunpack.c.l.b16 %v240
        %v526 = vunpack.c.h.b16 %v240
        %v527 = vunpack.c.l.b16 %v241
        %v528 = vunpack.c.h.b16 %v241
        %v529 = vunpack.c.l.b16 %v242
        %v530 = vunpack.c.h.b16 %v242
        %v531 = vunpack.c.l.b16 %v243
        %v532 = vunpack.c.h.b16 %v243
        %v533 = vunpack.c.l.b16 %v244
        %v534 = vunpack.c.h.b16 %v244
        %v535 = vunpack.c.l.b16 %v245
        %v536 = vunpack.c.h.b16 %v245
        %v537 = vunpack.c.l.b16 %v246
        %v538 = vunpack.c.h.b16 %v246
        %v539 = vunpack.c.l.b16 %v247
        %v540 = vunpack.c.h.b16 %v247
        %v541 = vunpack.c.l.b16 %v248
        %v542 = vunpack.c.h.b16 %v248
        %v543 = vunpack.c.l.b16 %v249
        %v544 = vunpack.c.h.b16 %v249
        %v545 = vunpack.c.l.b16 %v250
        %v546 = vunpack.c.h.b16 %v250
        %v547 = vunpack.c.l.b16 %v251
        %v548 = vunpack.c.h.b16 %v251
        %v549 = vunpack.c.l.b16 %v252
        %v550 = vunpack.c.h.b16 %v252
        %v551 = vunpack.c.l.b16 %v253
        %v552 = vunpack.c.h.b16 %v253
        %v553 = vunpack.c.l.b16 %v254
        %v554 = vunpack.c.h.b16 %v254
        %v555 = vunpack.c.l.b16 %v255
        %v556 = vunpack.c.h.b16 %v255
        %v557 = vunpack.c.l.b16 %v256
        %v558 = vunpack.c.h.b16 %v256
        %v559 = vunpack.c.l.b16 %v257
        %v560 = vunpack.c.h.b16 %v257
        %v561 = vunpack.c.l.b16 %v258
        %v562 = vunpack.c.h.b16 %v258
        %v563 = vunpack.c.l.b16 %v259
        %v564 = vunpack.c.h.b16 %v259
        %v565 = vunpack.c.l.b16 %v260
        %v566 = vunpack.c.h.b16 %v260
        %v567 = vunpack.c.l.b16 %v261
        %v568 = vunpack.c.h.b16 %v261
        %v569 = vunpack.c.l.b16 %v262
        %v570 = vunpack.c.h.b16 %v262
        %v571 = vunpack.c.l.b16 %v263
        %v572 = vunpack.c.h.b16 %v263
        %v573 = vunpack.c.l.b16 %v264
        %v574 = vunpack.c.h.b16 %v264
        %v575 = vunpack.c.l.b16 %v265
        %v576 = vunpack.c.h.b16 %v265
        %v577 = vunpack.c.l.b16 %v266
        %v578 = vunpack.c.h.b16 %v266
        %v579 = vunpack.c.l.b16 %v267
        %v580 = vunpack.c.h.b16 %v267
        %v581 = vunpack.c.l.b16 %v268
        %v582 = vunpack.c.h.b16 %v268
        %v583 = vunpack.c.l.b16 %v269
        %v584 = vunpack.c.h.b16 %v269
        %v585 = vunpack.c.l.b16 %v270
        %v586 = vunpack.c.h.b16 %v270
        %v587 = vunpack.c.l.b16 %v271
        %v588 = vunpack.c.h.b16 %v271
        %v589 = vunpack.c.l.b16 %v272
        %v590 = vunpack.c.h.b16 %v272
        %v591 = vunpack.c.l.b16 %v273
        %v592 = vunpack.c.h.b16 %v273
        %v593 = vunpack.c.l.b16 %v274
        %v594 = vunpack.c.h.b16 %v274
        %v595 = vunpack.c.l.b16 %v275
        %v596 = vunpack.c.h.b16 %v275
        %v597 = vunpack.c.l.b16 %v276
        %v598 = vunpack.c.h.b16 %v276
        %v599 = vunpack.c.l.b16 %v277
        %v600 = vunpack.c.h.b16 %v277
        %v601 = vunpack.c.l.b16 %v278
        %v602 = vunpack.c.h.b16 %v278
        %v603 = vunpack.c.l.b16 %v279
        %v604 = vunpack.c.h.b16 %v279
        %v605 = vunpack.c.l.b16 %v280
        %v606 = vunpack.c.h.b16 %v280
        %v607 = vunpack.c.l.b16 %v281
        %v608 = vunpack.c.h.b16 %v281
        %v609 = vunpack.c.l.b16 %v282
        %v610 = vunpack.c.h.b16 %v282
        %v611 = vunpack.c.l.b16 %v283
        %v612 = vunpack.c.h.b16 %v283
        %v613 = vunpack.c.l.b16 %v284
        %v614 = vunpack.c.h.b16 %v284
        %v615 = vunpack.c.l.b16 %v285
        %v616 = vunpack.c.h.b16 %v285
        %v617 = vunpack.c.l.b16 %v286
        %v618 = vunpack.c.h.b16 %v286
        %v619 = vunpack.c.l.b16 %v287
        %v620 = vunpack.c.h.b16 %v287
        %v621 = vunpack.c.l.b16 %v288
        %v622 = vunpack.c.h.b16 %v288
        %v623 = vunpack.c.l.b16 %v289
        %v624 = vunpack.c.h.b16 %v289
        %v625 = vunpack.c.l.b16 %v290
        %v626 = vunpack.c.h.b16 %v290
        %v627 = vunpack.c.l.b16 %v291
        %v628 = vunpack.c.h.b16 %v291
        %v629 = vunpack.c.l.b16 %v292
        %v630 = vunpack.c.h.b16 %v292
        %v631 = vunpack.c.l.b16 %v293
        %v632 = vunpack.c.h.b16 %v293
        %v633 = vunpack.c.l.b16 %v294
        %v634 = vunpack.c.h.b16 %v294
        %v635 = vunpack.c.l.b16 %v295
        %v636 = vunpack.c.h.b16 %v295
        %v637 = vunpack.c.l.b16 %v296
        %v638 = vunpack.c.h.b16 %v296
        %v639 = vunpack.c.l.b16 %v297
        %v640 = vunpack.c.h.b16 %v297
        %v641 = vunpack.c.l.b16 %v298
        %v642 = vunpack.c.h.b16 %v298
        %v643 = vunpack.c.l.b16 %v299
        %v644 = vunpack.c.h.b16 %v299
        %v645 = vunpack.c.l.b16 %v300
        %v646 = vunpack.c.h.b16 %v300
        %v647 = vunpack.c.l.b16 %v301
        %v648 = vunpack.c.h.b16 %v301
        %v649 = vunpack.c.l.b16 %v302
        %v650 = vunpack.c.h.b16 %v302
        %v651 = vunpack.c.l.b16 %v303
        %v652 = vunpack.c.h.b16 %v303
        %v653 = vunpack.c.l.b16 %v304
        %v654 = vunpack.c.h.b16 %v304
        %v655 = vunpack.c.l.b16 %v305
        %v656 = vunpack.c.h.b16 %v305
        %v657 = vunpack.c.l.b16 %v306
        %v658 = vunpack.c.h.b16 %v306
        %v659 = vunpack.c.l.b16 %v307
        %v660 = vunpack.c.h.b16 %v307
        %v661 = vunpack.c.l.b16 %v308
        %v662 = vunpack.c.h.b16 %v308
        %v663 = vunpack.c.l.b16 %v309
        %v664 = vunpack.c.h.b16 %v309
        %v665 = vunpack.c.l.b16 %v310
        %v666 = vunpack.c.h.b16 %v310
        %v667 = vunpack.c.l.b16 %v311
        %v668 = vunpack.c.h.b16 %v311
        %v669 = vunpack.c.l.b16 %v312
        %v670 = vunpack.c.h.b16 %v312
        %v671 = vunpack.c.l.b16 %v313
        %v672 = vunpack.c.h.b16 %v313
        %v673 = vunpack.c.l.b16 %v314
        %v674 = vunpack.c.h.b16 %v314
        %v675 = vunpack.c.l.b16 %v315
        %v676 = vunpack.c.h.b16 %v315
        %v677 = vunpack.c.l.b16 %v316
        %v678 = vunpack.c.h.b16 %v316
        %v679 = vunpack.c.l.b16 %v317
        %v680 = vunpack.c.h.b16 %v317
        %v681 = vunpack.c.l.b16 %v318
        %v682 = vunpack.c.h.b16 %v318
        %v683 = vunpack.c.l.b16 %v319
        %v684 = vunpack.c.h.b16 %v319
        %v685 = vunpack.c.l.b16 %v320
        %v686 = vunpack.c.h.b16 %v320
        %v687 = vunpack.c.l.b16 %v321
        %v688 = vunpack.c.h.b16 %v321
        %v689 = vunpack.c.l.b16 %v322
        %v690 = vunpack.c.h.b16 %v322
        %v691 = vunpack.c.l.b16 %v323
        %v692 = vunpack.c.h.b16 %v323
        %v693 = vunpack.c.l.b16 %v324
        %v694 = vunpack.c.h.b16 %v324
        %v695 = vunpack.c.l.b16 %v325
        %v696 = vunpack.c.h.b16 %v325
        %v697 = vunpack.c.l.b16 %v326
        %v698 = vunpack.c.h.b16 %v326
        %v699 = vunpack.c.l.b16 %v327
        %v700 = vunpack.c.h.b16 %v327
        %v701 = vunpack.c.l.b16 %v328
        %v702 = vunpack.c.h.b16 %v328
        %v703 = vunpack.c.l.b16 %v329
        %v704 = vunpack.c.h.b16 %v329
        %v705 = vunpack.c.l.b16 %v330
        %v706 = vunpack.c.h.b16 %v330
        %v707 = vunpack.c.l.b16 %v331
        %v708 = vunpack.c.h.b16 %v331
        %v709 = vunpack.c.l.b16 %v332
        %v710 = vunpack.c.h.b16 %v332
        %v711 = vunpack.c.l.b16 %v333
        %v712 = vunpack.c.h.b16 %v333
        %v713 = vunpack.c.l.b16 %v334
        %v714 = vunpack.c.h.b16 %v334
        %v715 = vunpack.c.l.b16 %v335
        %v716 = vunpack.c.h.b16 %v335
        %v717 = vunpack.c.l.b16 %v336
        %v718 = vunpack.c.h.b16 %v336
        %v719 = vunpack.c.l.b16 %v337
        %v720 = vunpack.c.h.b16 %v337
        %v721 = vunpack.c.l.b16 %v338
        %v722 = vunpack.c.h.b16 %v338
        %v723 = vunpack.c.l.b16 %v339
        %v724 = vunpack.c.h.b16 %v339
        %v725 = vunpack.c.l.b16 %v340
        %v726 = vunpack.c.h.b16 %v340
        %v727 = vunpack.c.l.b16 %v341
        %v728 = vunpack.c.h.b16 %v341
        %v729 = vunpack.c.l.b16 %v342
        %v730 = vunpack.c.h.b16 %v342
        %v731 = vunpack.c.l.b16 %v343
        %v732 = vunpack.c.h.b16 %v343
        %v733 = vunpack.c.l.b16 %v344
        %v734 = vunpack.c.h.b16 %v344
        %v735 = vunpack.c.l.b16 %v345
        %v736 = vunpack.c.h.b16 %v345
        %v737 = vunpack.c.l.b16 %v346
        %v738 = vunpack.c.h.b16 %v346
        %v739 = vunpack.c.l.b16 %v347
        %v740 = vunpack.c.h.b16 %v347
        %v741 = vunpack.c.l.b16 %v348
        %v742 = vunpack.c.h.b16 %v348
        %v743 = vunpack.c.l.b16 %v349
        %v744 = vunpack.c.h.b16 %v349
        %v745 = vunpack.c.l.b16 %v350
        %v746 = vunpack.c.h.b16 %v350
        %v747 = vunpack.c.l.b16 %v351
        %v748 = vunpack.c.h.b16 %v351
        %v749 = vunpack.c.l.b16 %v352
        %v750 = vunpack.c.h.b16 %v352
        %v751 = vunpack.c.l.b16 %v353
        %v752 = vunpack.c.h.b16 %v353
        %v753 = vunpack.c.l.b16 %v354
        %v754 = vunpack.c.h.b16 %v354
        %v755 = vunpack.c.l.b16 %v355
        %v756 = vunpack.c.h.b16 %v355
        %v757 = vunpack.c.l.b16 %v356
        %v758 = vunpack.c.h.b16 %v356
        %v759 = vunpack.c.l.b16 %v357
        %v760 = vunpack.c.h.b16 %v357
        %v761 = vunpack.c.l.b16 %v358
        %v762 = vunpack.c.h.b16 %v358
        %v763 = vunpack.c.l.b16 %v359
        %v764 = vunpack.c.h.b16 %v359
        %v765 = vunpack.c.l.b16 %v360
        %v766 = vunpack.c.h.b16 %v360
        %v767 = vunpack.c.l.b16 %v361
        %v768 = vunpack.c.h.b16 %v361
        %v769 = vunpack.c.l.b16 %v362
        %v770 = vunpack.c.h.b16 %v362
        %v771 = vunpack.c.l.b16 %v363
        %v772 = vunpack.c.h.b16 %v363
        %v773 = vpack.c.b16 %v525, %v517
        %v774 = vpack.c.b16 %v526, %v518
        %v775 = vpack.c.b16 %v527, %v519
        %v776 = vpack.c.b16 %v528, %v520
        %v777 = vpack.c.b16 %v529, %v521
        %v778 = vpack.c.b16 %v530, %v522
        %v779 = vpack.c.b16 %v531, %v523
        %v780 = vpack.c.b16 %v532, %v524
        %v781 = vpack.c.b16 %v541, %v533
        %v782 = vpack.c.b16 %v542, %v534
        %v783 = vpack.c.b16 %v543, %v535
        %v784 = vpack.c.b16 %v544, %v536
        %v785 = vpack.c.b16 %v545, %v537
        %v786 = vpack.c.b16 %v546, %v538
        %v787 = vpack.c.b16 %v547, %v539
        %v788 = vpack.c.b16 %v548, %v540
        %v789 = vpack.c.b16 %v557, %v549
        %v790 = vpack.c.b16 %v558, %v550
        %v791 = vpack.c.b16 %v559, %v551
        %v792 = vpack.c.b16 %v560, %v552
        %v793 = vpack.c.b16 %v561, %v553
        %v794 = vpack.c.b16 %v562, %v554
        %v795 = vpack.c.b16 %v563, %v555
        %v796 = vpack.c.b16 %v564, %v556
        %v797 = vpack.c.b16 %v573, %v565
        %v798 = vpack.c.b16 %v574, %v566
        %v799 = vpack.c.b16 %v575, %v567
        %v800 = vpack.c.b16 %v576, %v568
        %v801 = vpack.c.b16 %v577, %v569
        %v802 = vpack.c.b16 %v578, %v570
        %v803 = vpack.c.b16 %v579, %v571
        %v804 = vpack.c.b16 %v580, %v572
        %v805 = vpack.c.b16 %v589, %v581
        %v806 = vpack.c.b16 %v590, %v582
        %v807 = vpack.c.b16 %v591, %v583
        %v808 = vpack.c.b16 %v592, %v584
        %v809 = vpack.c.b16 %v593, %v585
        %v810 = vpack.c.b16 %v594, %v586
        %v811 = vpack.c.b16 %v595, %v587
        %v812 = vpack.c.b16 %v596, %v588
        %v813 = vpack.c.b16 %v605, %v597
        %v814 = vpack.c.b16 %v606, %v598
        %v815 = vpack.c.b16 %v607, %v599
        %v816 = vpack.c.b16 %v608, %v600
        %v817 = vpack.c.b16 %v609, %v601
        %v818 = vpack.c.b16 %v610, %v602
        %v819 = vpack.c.b16 %v611, %v603
        %v820 = vpack.c.b16 %v612, %v604
        %v821 = vpack.c.b16 %v621, %v613
        %v822 = vpack.c.b16 %v622, %v614
        %v823 = vpack.c.b16 %v623, %v615
        %v824 = vpack.c.b16 %v624, %v616
        %v825 = vpack.c.b16 %v625, %v617
        %v826 = vpack.c.b16 %v626, %v618
        %v827 = vpack.c.b16 %v627, %v619
        %v828 = vpack.c.b16 %v628, %v620
        %v829 = vpack.c.b16 %v637, %v629
        %v830 = vpack.c.b16 %v638, %v630
        %v831 = vpack.c.b16 %v639, %v631
        %v832 = vpack.c.b16 %v640, %v632
        %v833 = vpack.c.b16 %v641, %v633
        %v834 = vpack.c.b16 %v642, %v634
        %v835 = vpack.c.b16 %v643, %v635
        %v836 = vpack.c.b16 %v644, %v636
        %v837 = vpack.c.b16 %v653, %v645
        %v838 = vpack.c.b16 %v654, %v646
        %v839 = vpack.c.b16 %v655, %v647
        %v840 = vpack.c.b16 %v656, %v648
        %v841 = vpack.c.b16 %v657, %v649
        %v842 = vpack.c.b16 %v658, %v650
        %v843 = vpack.c.b16 %v659, %v651
        %v844 = vpack.c.b16 %v660, %v652
        %v845 = vpack.c.b16 %v669, %v661
        %v846 = vpack.c.b16 %v670, %v662
        %v847 = vpack.c.b16 %v671, %v663
        %v848 = vpack.c.b16 %v672, %v664
        %v849 = vpack.c.b16 %v673, %v665
        %v850 = vpack.c.b16 %v674, %v666
        %v851 = vpack.c.b16 %v675, %v667
        %v852 = vpack.c.b16 %v676, %v668
        %v853 = vpack.c.b16 %v685, %v677
        %v854 = vpack.c.b16 %v686, %v678
        %v855 = vpack.c.b16 %v687, %v679
        %v856 = vpack.c.b16 %v688, %v680
        %v857 = vpack.c.b16 %v689, %v681
        %v858 = vpack.c.b16 %v690, %v682
        %v859 = vpack.c.b16 %v691, %v683
        %v860 = vpack.c.b16 %v692, %v684
        %v861 = vpack.c.b16 %v701, %v693
        %v862 = vpack.c.b16 %v702, %v694
        %v863 = vpack.c.b16 %v703, %v695
        %v864 = vpack.c.b16 %v704, %v696
        %v865 = vpack.c.b16 %v705, %v697
        %v866 = vpack.c.b16 %v706, %v698
        %v867 = vpack.c.b16 %v707, %v699
        %v868 = vpack.c.b16 %v708, %v700
        %v869 = vpack.c.b16 %v717, %v709
        %v870 = vpack.c.b16 %v718, %v710
        %v871 = vpack.c.b16 %v719, %v711
        %v872 = vpack.c.b16 %v720, %v712
        %v873 = vpack.c.b16 %v721, %v713
        %v874 = vpack.c.b16 %v722, %v714
        %v875 = vpack.c.b16 %v723, %v715
        %v876 = vpack.c.b16 %v724, %v716
        %v877 = vpack.c.b16 %v733, %v725
        %v878 = vpack.c.b16 %v734, %v726
        %v879 = vpack.c.b16 %v735, %v727
        %v880 = vpack.c.b16 %v736, %v728
        %v881 = vpack.c.b16 %v737, %v729
        %v882 = vpack.c.b16 %v738, %v730
        %v883 = vpack.c.b16 %v739, %v731
        %v884 = vpack.c.b16 %v740, %v732
        %v885 = vpack.c.b16 %v749, %v741
        %v886 = vpack.c.b16 %v750, %v742
        %v887 = vpack.c.b16 %v751, %v743
        %v888 = vpack.c.b16 %v752, %v744
        %v889 = vpack.c.b16 %v753, %v745
        %v890 = vpack.c.b16 %v754, %v746
        %v891 = vpack.c.b16 %v755, %v747
        %v892 = vpack.c.b16 %v756, %v748
        %v893 = vpack.c.b16 %v765, %v757
        %v894 = vpack.c.b16 %v766, %v758
        %v895 = vpack.c.b16 %v767, %v759
        %v896 = vpack.c.b16 %v768, %v760
        %v897 = vpack.c.b16 %v769, %v761
        %v898 = vpack.c.b16 %v770, %v762
        %v899 = vpack.c.b16 %v771, %v763
        %v900 = vpack.c.b16 %v772, %v764
        %1029 = vmatpush.bf16.msra.mxu0 %v829
        %1030 = vmatpush.bf16.msra.mxu0 %v821
        %1031 = vmatpush.bf16.msra.mxu0 %v813
        %1032 = vmatpush.bf16.msra.mxu0 %v805
        %1033 = vmatpush.bf16.msra.mxu0 %v797
        %1034 = vmatpush.bf16.msra.mxu0 %v789
        %1035 = vmatpush.bf16.msra.mxu0 %v781
        %1036 = vmatpush.bf16.msra.mxu0 %v773
        %1037 = vmatmul.bf16.gmra.mxu0 %v385
        %v1038 = vpop.f32.mrf.mxu0
        %v1039 = vadd.f32 %v366, %v1038
        %v1040 = vpop.f32.mrf.mxu0
        %1041 = vdwg.mxu0
        %1042 = vmatpush.bf16.msra.mxu0 %v893
        %1043 = vmatpush.bf16.msra.mxu0 %v885
        %1044 = vmatpush.bf16.msra.mxu0 %v877
        %1045 = vmatpush.bf16.msra.mxu0 %v869
        %1046 = vmatpush.bf16.msra.mxu0 %v861
        %1047 = vmatpush.bf16.msra.mxu0 %v853
        %1048 = vmatpush.bf16.msra.mxu0 %v845
        %1049 = vmatpush.bf16.msra.mxu0 %v837
        %1050 = vmatmul.bf16.gmra.mxu0 %v386
        %v1051 = vpop.f32.mrf.mxu0
        %v1052 = vadd.f32 %v1039, %v1051
        %v1053 = vpop.f32.mrf.mxu0
        %1054 = vdwg.mxu0
        %1055 = vmatpush.bf16.msra.mxu0 %v830
        %1056 = vmatpush.bf16.msra.mxu0 %v822
        %1057 = vmatpush.bf16.msra.mxu0 %v814
        %1058 = vmatpush.bf16.msra.mxu0 %v806
        %1059 = vmatpush.bf16.msra.mxu0 %v798
        %1060 = vmatpush.bf16.msra.mxu0 %v790
        %1061 = vmatpush.bf16.msra.mxu0 %v782
        %1062 = vmatpush.bf16.msra.mxu0 %v774
        %1063 = vmatmul.bf16.gmra.mxu0 %v385
        %v1064 = vpop.f32.mrf.mxu0
        %v1065 = vadd.f32 %v367, %v1064
        %v1066 = vpop.f32.mrf.mxu0
        %1067 = vdwg.mxu0
        %1068 = vmatpush.bf16.msra.mxu0 %v894
        %1069 = vmatpush.bf16.msra.mxu0 %v886
        %1070 = vmatpush.bf16.msra.mxu0 %v878
        %1071 = vmatpush.bf16.msra.mxu0 %v870
        %1072 = vmatpush.bf16.msra.mxu0 %v862
        %1073 = vmatpush.bf16.msra.mxu0 %v854
        %1074 = vmatpush.bf16.msra.mxu0 %v846
        %1075 = vmatpush.bf16.msra.mxu0 %v838
        %1076 = vmatmul.bf16.gmra.mxu0 %v386
        %v1077 = vpop.f32.mrf.mxu0
        %v1078 = vadd.f32 %v1065, %v1077
        %v1079 = vpop.f32.mrf.mxu0
        %1080 = vdwg.mxu0
        %1081 = vmatpush.bf16.msra.mxu0 %v831
        %1082 = vmatpush.bf16.msra.mxu0 %v823
        %1083 = vmatpush.bf16.msra.mxu0 %v815
        %1084 = vmatpush.bf16.msra.mxu0 %v807
        %1085 = vmatpush.bf16.msra.mxu0 %v799
        %1086 = vmatpush.bf16.msra.mxu0 %v791
        %1087 = vmatpush.bf16.msra.mxu0 %v783
        %1088 = vmatpush.bf16.msra.mxu0 %v775
        %1089 = vmatmul.bf16.gmra.mxu0 %v385
        %v1090 = vpop.f32.mrf.mxu0
        %v1091 = vadd.f32 %v368, %v1090
        %v1092 = vpop.f32.mrf.mxu0
        %1093 = vdwg.mxu0
        %1094 = vmatpush.bf16.msra.mxu0 %v895
        %1095 = vmatpush.bf16.msra.mxu0 %v887
        %1096 = vmatpush.bf16.msra.mxu0 %v879
        %1097 = vmatpush.bf16.msra.mxu0 %v871
        %1098 = vmatpush.bf16.msra.mxu0 %v863
        %1099 = vmatpush.bf16.msra.mxu0 %v855
        %1100 = vmatpush.bf16.msra.mxu0 %v847
        %1101 = vmatpush.bf16.msra.mxu0 %v839
        %1102 = vmatmul.bf16.gmra.mxu0 %v386
        %v1103 = vpop.f32.mrf.mxu0
        %v1104 = vadd.f32 %v1091, %v1103
        %v1105 = vpop.f32.mrf.mxu0
        %1106 = vdwg.mxu0
        %1107 = vmatpush.bf16.msra.mxu0 %v832
        %1108 = vmatpush.bf16.msra.mxu0 %v824
        %1109 = vmatpush.bf16.msra.mxu0 %v816
        %1110 = vmatpush.bf16.msra.mxu0 %v808
        %1111 = vmatpush.bf16.msra.mxu0 %v800
        %1112 = vmatpush.bf16.msra.mxu0 %v792
        %1113 = vmatpush.bf16.msra.mxu0 %v784
        %1114 = vmatpush.bf16.msra.mxu0 %v776
        %1115 = vmatmul.bf16.gmra.mxu0 %v385
        %v1116 = vpop.f32.mrf.mxu0
        %v1117 = vadd.f32 %v369, %v1116
        %v1118 = vpop.f32.mrf.mxu0
        %1119 = vdwg.mxu0
        %1120 = vmatpush.bf16.msra.mxu0 %v896
        %1121 = vmatpush.bf16.msra.mxu0 %v888
        %1122 = vmatpush.bf16.msra.mxu0 %v880
        %1123 = vmatpush.bf16.msra.mxu0 %v872
        %1124 = vmatpush.bf16.msra.mxu0 %v864
        %1125 = vmatpush.bf16.msra.mxu0 %v856
        %1126 = vmatpush.bf16.msra.mxu0 %v848
        %1127 = vmatpush.bf16.msra.mxu0 %v840
        %1128 = vmatmul.bf16.gmra.mxu0 %v386
        %v1129 = vpop.f32.mrf.mxu0
        %v1130 = vadd.f32 %v1117, %v1129
        %v1131 = vpop.f32.mrf.mxu0
        %1132 = vdwg.mxu0
        %1133 = vmatpush.bf16.msra.mxu0 %v833
        %1134 = vmatpush.bf16.msra.mxu0 %v825
        %1135 = vmatpush.bf16.msra.mxu0 %v817
        %1136 = vmatpush.bf16.msra.mxu0 %v809
        %1137 = vmatpush.bf16.msra.mxu0 %v801
        %1138 = vmatpush.bf16.msra.mxu0 %v793
        %1139 = vmatpush.bf16.msra.mxu0 %v785
        %1140 = vmatpush.bf16.msra.mxu0 %v777
        %1141 = vmatmul.bf16.gmra.mxu0 %v385
        %v1142 = vpop.f32.mrf.mxu0
        %v1143 = vadd.f32 %v370, %v1142
        %v1144 = vpop.f32.mrf.mxu0
        %1145 = vdwg.mxu0
        %1146 = vmatpush.bf16.msra.mxu0 %v897
        %1147 = vmatpush.bf16.msra.mxu0 %v889
        %1148 = vmatpush.bf16.msra.mxu0 %v881
        %1149 = vmatpush.bf16.msra.mxu0 %v873
        %1150 = vmatpush.bf16.msra.mxu0 %v865
        %1151 = vmatpush.bf16.msra.mxu0 %v857
        %1152 = vmatpush.bf16.msra.mxu0 %v849
        %1153 = vmatpush.bf16.msra.mxu0 %v841
        %1154 = vmatmul.bf16.gmra.mxu0 %v386
        %v1155 = vpop.f32.mrf.mxu0
        %v1156 = vadd.f32 %v1143, %v1155
        %v1157 = vpop.f32.mrf.mxu0
        %1158 = vdwg.mxu0
        %1159 = vmatpush.bf16.msra.mxu0 %v834
        %1160 = vmatpush.bf16.msra.mxu0 %v826
        %1161 = vmatpush.bf16.msra.mxu0 %v818
        %1162 = vmatpush.bf16.msra.mxu0 %v810
        %1163 = vmatpush.bf16.msra.mxu0 %v802
        %1164 = vmatpush.bf16.msra.mxu0 %v794
        %1165 = vmatpush.bf16.msra.mxu0 %v786
        %1166 = vmatpush.bf16.msra.mxu0 %v778
        %1167 = vmatmul.bf16.gmra.mxu0 %v385
        %v1168 = vpop.f32.mrf.mxu0
        %v1169 = vadd.f32 %v371, %v1168
        %v1170 = vpop.f32.mrf.mxu0
        %1171 = vdwg.mxu0
        %1172 = vmatpush.bf16.msra.mxu0 %v898
        %1173 = vmatpush.bf16.msra.mxu0 %v890
        %1174 = vmatpush.bf16.msra.mxu0 %v882
        %1175 = vmatpush.bf16.msra.mxu0 %v874
        %1176 = vmatpush.bf16.msra.mxu0 %v866
        %1177 = vmatpush.bf16.msra.mxu0 %v858
        %1178 = vmatpush.bf16.msra.mxu0 %v850
        %1179 = vmatpush.bf16.msra.mxu0 %v842
        %1180 = vmatmul.bf16.gmra.mxu0 %v386
        %v1181 = vpop.f32.mrf.mxu0
        %v1182 = vadd.f32 %v1169, %v1181
        %v1183 = vpop.f32.mrf.mxu0
        %1184 = vdwg.mxu0
        %1185 = vmatpush.bf16.msra.mxu0 %v835
        %1186 = vmatpush.bf16.msra.mxu0 %v827
        %1187 = vmatpush.bf16.msra.mxu0 %v819
        %1188 = vmatpush.bf16.msra.mxu0 %v811
        %1189 = vmatpush.bf16.msra.mxu0 %v803
        %1190 = vmatpush.bf16.msra.mxu0 %v795
        %1191 = vmatpush.bf16.msra.mxu0 %v787
        %1192 = vmatpush.bf16.msra.mxu0 %v779
        %1193 = vmatmul.bf16.gmra.mxu0 %v385
        %v1194 = vpop.f32.mrf.mxu0
        %v1195 = vadd.f32 %v372, %v1194
        %v1196 = vpop.f32.mrf.mxu0
        %1197 = vdwg.mxu0
        %1198 = vmatpush.bf16.msra.mxu0 %v899
        %1199 = vmatpush.bf16.msra.mxu0 %v891
        %1200 = vmatpush.bf16.msra.mxu0 %v883
        %1201 = vmatpush.bf16.msra.mxu0 %v875
        %1202 = vmatpush.bf16.msra.mxu0 %v867
        %1203 = vmatpush.bf16.msra.mxu0 %v859
        %1204 = vmatpush.bf16.msra.mxu0 %v851
        %1205 = vmatpush.bf16.msra.mxu0 %v843
        %1206 = vmatmul.bf16.gmra.mxu0 %v386
        %v1207 = vpop.f32.mrf.mxu0
        %v1208 = vadd.f32 %v1195, %v1207
        %v1209 = vpop.f32.mrf.mxu0
        %1210 = vdwg.mxu0
        %1211 = vmatpush.bf16.msra.mxu0 %v836
        %1212 = vmatpush.bf16.msra.mxu0 %v828
        %1213 = vmatpush.bf16.msra.mxu0 %v820
        %1214 = vmatpush.bf16.msra.mxu0 %v812
        %1215 = vmatpush.bf16.msra.mxu0 %v804
        %1216 = vmatpush.bf16.msra.mxu0 %v796
        %1217 = vmatpush.bf16.msra.mxu0 %v788
        %1218 = vmatpush.bf16.msra.mxu0 %v780
        %1219 = vmatmul.bf16.gmra.mxu0 %v385
        %v1220 = vpop.f32.mrf.mxu0
        %v1221 = vadd.f32 %v373, %v1220
        %v1222 = vpop.f32.mrf.mxu0
        %1223 = vdwg.mxu0
        %1224 = vmatpush.bf16.msra.mxu0 %v900
        %1225 = vmatpush.bf16.msra.mxu0 %v892
        %1226 = vmatpush.bf16.msra.mxu0 %v884
        %1227 = vmatpush.bf16.msra.mxu0 %v876
        %1228 = vmatpush.bf16.msra.mxu0 %v868
        %1229 = vmatpush.bf16.msra.mxu0 %v860
        %1230 = vmatpush.bf16.msra.mxu0 %v852
        %1231 = vmatpush.bf16.msra.mxu0 %v844
        %1232 = vmatmul.bf16.gmra.mxu0 %v386
        %v1233 = vpop.f32.mrf.mxu0
        %v1234 = vadd.f32 %v1221, %v1233
        %v1235 = vpop.f32.mrf.mxu0
        %1236 = vdwg.mxu0
        %v1237 = vtanh.pop %v1052
        %v1238 = vtanh.pop %v1078
        %v1239 = vtanh.pop %v1104
        %v1240 = vtanh.pop %v1130
        %v1241 = vtanh.pop %v1156
        %v1242 = vtanh.pop %v1182
        %v1243 = vtanh.pop %v1208
        %v1244 = vtanh.pop %v1234
        %1245 = vst [vmem:[%s233] sm:$0xff] %v1237
        %1246 = vst [vmem:[%s233 + $0x8] sm:$0xff] %v1238
        %1247 = vst [vmem:[%s233 + $0x10] sm:$0xff] %v1239
        %1248 = vst [vmem:[%s233 + $0x18] sm:$0xff] %v1240
        %1249 = vst [vmem:[%s233 + $0x20] sm:$0xff] %v1241
        %1250 = vst [vmem:[%s233 + $0x28] sm:$0xff] %v1242
        %1251 = vst [vmem:[%s233 + $0x30] sm:$0xff] %v1243
        %1252 = vst [vmem:[%s233 + $0x38] sm:$0xff] %v1244
        %s1253 = smul.u32 8, %s20
        %p1254 = scmp.lt.s32.totalorder %s1253, 31
        %s1255 = scalar_select %p1254, %s1253, 31
        %s1256 = smul.addr %s1255, 8
        %s1257 = scalar_lea.vmem %s3, %s1256
        // Predicated region
        $region41: #{generator_forward.3} parent=31 // pred_check
          %p1258 = pneg %p111
        $region42: #{generator_forward.3} parent=31 // pred_check_branch
          %1260 = sbr.rel (%p1258) target = $region44
        $region43: #{generator_forward.3} parent=31 // pred_region
          %s1261 = smul.u32 8, %s20
        $region44: #{generator_forward.3} parent=31 // pred_fallthru
          _
      $region32: #{generator_forward.3} parent=5 // pred_fallthru
        _
      %p1262 = scmp.le.s32.totalorder 2, %s15
      // Predicated region
      $region45: #{generator_forward.3} parent=5 // pred_check
        %p1263 = pneg %p1262
      $region46: #{generator_forward.3} parent=5 // pred_check_branch
        %1265 = sbr.rel (%p1263) target = $region48
      $region47: #{generator_forward.3} parent=5 // pred_region
        %s1266 = ssub.s32 %s15, 2
        // Predicated region
        $region49: #{generator_forward.3} parent=47 // pred_check
          %p1267 = pneg %p117
        $region50: #{generator_forward.3} parent=47 // pred_check_branch
          %1269 = sbr.rel (%p1267) target = $region52
        $region51: #{generator_forward.3} parent=47 // pred_region
          %s1270 = smul.u32 8, %s21
          %p1271 = scmp.lt.s32.totalorder %s1270, 31
          %s1272 = scalar_select %p1271, %s1270, 31
          %s1273 = smul.addr %s1272, 8
          %s1274 = scalar_lea.vmem %s3, %s1273
        $region52: #{generator_forward.3} parent=47 // pred_fallthru
          _
      $region48: #{generator_forward.3} parent=5 // pred_fallthru
        _
    $region6: #{generator_forward.3} parent=1 // loop_footer
      %s19 = sadd.s32 1, %s15
    $region7: #{generator_forward.3} parent=1 // loop_footer_branch
      %14 = sbr.rel target = $region3
    $region8: #{generator_forward.3} parent=1 // loop_exit
      _
    %1275 = vsyncpa [#allocation3], 1
    %s1276 = scalar_lea.sflag [#allocation3], 1
    %1277 = vsyncpa %s1276, 1
    %1278 = vsyncpa [#allocation5], 1
    %s1279 = scalar_lea.sflag [#allocation5], 1
    %1280 = vsyncpa %s1279, 1

</llo_original>
